<compile_context>
chip_gen: v7x
topology: tpu7x:2x2x1
jax: 0.10.0
libtpu: 0.0.40
codegen_flags: <defaults>
</compile_context>

<pallas_src>
import numpy as np
import jax
import jax.numpy as jnp
from jax import lax
from jax.experimental import pallas as pl
from jax.experimental.pallas import tpu as pltpu


_LANE = 128
_MIB = 1024 * 1024


def _round_up(x, m):
    return (x + m - 1) // m * m


# ---------------------------------------------------------------------------
# Per-generation tiling / VMEM plan
# ---------------------------------------------------------------------------
_HW_PLAN = None


def _hw_plan():
    """Tile targets + scoped-VMEM budget per TPU generation."""
    global _HW_PLAN
    if _HW_PLAN is not None:
        return _HW_PLAN
    vmem_phys = 128 * _MIB
    try:
        vmem_phys = int(getattr(pltpu.get_tpu_info(), "vmem_capacity_bytes", vmem_phys))
    except Exception:
        pass
    if vmem_phys >= 96 * _MIB:
        # v5e / v6e: 128 MiB physical VMEM -> big streamed tiles.
        _HW_PLAN = dict(vmem_limit=80 * _MIB, tm=1024, tk=4096, tk_fused=2048,
                        ts=2048, tb=4096)
    else:
        # v7x-class: 64 MiB physical VMEM -> keep double-buffered working sets <= ~28 MiB.
        _HW_PLAN = dict(vmem_limit=32 * _MIB, tm=512, tk=4096, tk_fused=2048,
                        ts=1024, tb=4096)
    return _HW_PLAN


def _choose_n_pad(n, max_tile):
    """Round N up to a multiple of the largest power-of-two quantum (<= max_tile) whose
    zero-padding overhead stays <= ~25%.  Extra zero streaming is far cheaper than the
    previous behaviour of collapsing every tile to 128 on awkward N."""
    n128 = _round_up(max(int(n), 1), _LANE)
    q = _LANE
    cand = _LANE
    while cand * 2 <= max_tile:
        cand *= 2
        if _round_up(n128, cand) - n128 <= n128 // 4:
            q = cand
    return _round_up(n128, q)


def _pick_tile(n_pad, target):
    """Largest multiple of 128 that divides n_pad and is <= min(target, n_pad)."""
    t = max(_LANE, min(int(target), n_pad) // _LANE * _LANE)
    while n_pad % t:
        t -= _LANE
    return t


def _tb_for(d, n_pad, target):
    """Row tile of X for the support kernel, capped so a (TB, D) buffer stays ~<=6 MiB."""
    cap = max(_LANE, (6 * _MIB // max(4 * int(d), 4)) // _LANE * _LANE)
    return _pick_tile(n_pad, min(target, cap))


def _cparams(dim_sem):
    return pltpu.CompilerParams(dimension_semantics=dim_sem,
                                vmem_limit_bytes=_hw_plan()["vmem_limit"])


def _pad2d(a, nrows, ncols):
    r, c = a.shape
    if r == nrows and c == ncols:
        return a
    return jnp.pad(a, ((0, nrows - r), (0, ncols - c)))


# ---------------------------------------------------------------------------
# Kernels
# ---------------------------------------------------------------------------
def _support_kernel(x_ref, w_ref, s_ref):
    # x: (TB, D), w: (1, D) -> s: (TB, 1).  A 1-wide MXU matmul would leave the MXU
    # <1% utilized; the VPU multiply + lane reduce is hidden under the X DMA anyway.
    s_ref[...] = jnp.sum(x_ref[...] * w_ref[...], axis=1, keepdims=True)


def _attn_matvec_kernel(a_ref, s_ref, b_ref, out_ref):
    # a: (TK, TM) tile of L (rows = reduction k, cols = output i)
    # s: (TK, 1) support slice   b: (1,) scalar in SMEM   out: (1, TM) lane-dense
    # NOTE: computes scores^T = s^T @ L, i.e. relies on L being symmetric (undirected
    # graphs, which is what normalization() produces).
    k = pl.program_id(1)

    @pl.when(k == 0)
    def _init():
        out_ref[...] = jnp.zeros_like(out_ref)

    out_ref[...] += jnp.sum(a_ref[...] * s_ref[...], axis=0, keepdims=True)

    @pl.when(k == pl.num_programs(1) - 1)
    def _finalize():
        out_ref[...] = jnp.tanh(out_ref[...] + b_ref[0])


def _degree_kernel(a_ref, deg_ref):
    # Row degrees of (A + I); the +I term is folded into the init (exactly +1 per row).
    @pl.when(pl.program_id(1) == 0)
    def _init():
        deg_ref[...] = jnp.ones(deg_ref.shape, deg_ref.dtype)

    deg_ref[...] += jnp.sum(a_ref[...], axis=1, keepdims=True)


def _scale_adj_kernel(a_ref, dr_ref, dc_ref, out_ref):
    # L = D^-0.5 (A + I) D^-0.5, elementwise per (TS, TS) tile; identity only on the
    # diagonal tiles; output aliased onto the padded-A buffer.
    out_ref[...] = dr_ref[...] * a_ref[...] * dc_ref[...]

    @pl.when(pl.program_id(0) == pl.program_id(1))
    def _add_identity():
        ts = a_ref.shape[0]
        rr = lax.broadcasted_iota(jnp.int32, (ts, ts), 0)
        cc = lax.broadcasted_iota(jnp.int32, (ts, ts), 1)
        out_ref[...] += (rr == cc).astype(jnp.float32) * (dr_ref[...] * dc_ref[...])


def _fused_norm_score_kernel(a_ref, dr_ref, dc_ref, t_ref, l_ref, u_ref):
    # One streaming pass over the raw binary adjacency A (symmetric, no self loops):
    #   u^T  += t^T @ A        with t = dinv * support   (score accumulation)
    #   L     = dr * A * dc  (+ dr*dc on the global diagonal)  emitted per tile
    # scores = tanh(dinv * (u + t) + b) is an O(N) epilogue outside the kernel.
    i = pl.program_id(0)
    k = pl.program_id(1)

    @pl.when(k == 0)
    def _init():
        u_ref[...] = jnp.zeros_like(u_ref)

    a = a_ref[...]
    u_ref[...] += jnp.sum(a * t_ref[...], axis=0, keepdims=True)
    l_ref[...] = dr_ref[...] * a * dc_ref[...]

    tk, tm = a.shape
    row0 = k * tk
    col0 = i * tm

    @pl.when(jnp.logical_and(row0 < col0 + tm, col0 < row0 + tk))
    def _add_identity():          # only tiles crossing the global diagonal pay for this
        rr = lax.broadcasted_iota(jnp.int32, (tk, tm), 0) + row0
        cc = lax.broadcasted_iota(jnp.int32, (tk, tm), 1) + col0
        l_ref[...] += (rr == cc).astype(jnp.float32) * (dr_ref[...] * dc_ref[...])


# ---------------------------------------------------------------------------
# Kernel wrappers
# ---------------------------------------------------------------------------
def _run_degree(a_pad, n_pad, tm, tk):
    return pl.pallas_call(
        _degree_kernel,
        out_shape=jax.ShapeDtypeStruct((n_pad, 1), jnp.float32),
        grid=(n_pad // tm, n_pad // tk),
        in_specs=[pl.BlockSpec((tm, tk), lambda i, j: (i, j))],
        out_specs=pl.BlockSpec((tm, 1), lambda i, j: (i, 0)),
        compiler_params=_cparams(("parallel", "arbitrary")),
    )(a_pad)


def _run_support(x_pad, w_row, n_pad, tb):
    d = x_pad.shape[1]
    return pl.pallas_call(
        _support_kernel,
        out_shape=jax.ShapeDtypeStruct((n_pad, 1), jnp.float32),
        grid=(n_pad // tb,),
        in_specs=[pl.BlockSpec((tb, d), lambda i: (i, 0)),
                  pl.BlockSpec((1, d), lambda i: (0, 0))],
        out_specs=pl.BlockSpec((tb, 1), lambda i: (i, 0)),
        compiler_params=_cparams(("parallel",)),
    )(x_pad, w_row)


@jax.jit
def attn_scores(adjacency, input_feature, w, b):
    """tanh(L @ (X @ w) + b) as a (N,) vector (module-faithful path; `adjacency` is L)."""
    n, d = input_feature.shape
    hw = _hw_plan()
    n_pad = _choose_n_pad(n, hw["tk"])
    tm = _pick_tile(n_pad, hw["tm"])
    if n_pad // tm < 2:                      # keep >= 2 parallel blocks for v7x's 2 TCs
        tm = _pick_tile(n_pad, max(_LANE, n_pad // 2))
    tk = _pick_tile(n_pad, hw["tk"])
    tb = _tb_for(d, n_pad, hw["tb"])

    a_pad = _pad2d(jnp.asarray(adjacency, jnp.float32), n_pad, n_pad)
    x_pad = _pad2d(jnp.asarray(input_feature, jnp.float32), n_pad, d)
    w_row = jnp.asarray(w, jnp.float32).reshape(1, d)
    b_vec = jnp.asarray(b, jnp.float32).reshape(1)

    support = _run_support(x_pad, w_row, n_pad, tb)   # padded rows are zero

    scores_t = pl.pallas_call(
        _attn_matvec_kernel,
        out_shape=jax.ShapeDtypeStruct((1, n_pad), jnp.float32),
        grid=(n_pad // tm, n_pad // tk),              # reduction axis last ("arbitrary")
        in_specs=[pl.BlockSpec((tk, tm), lambda i, k: (k, i)),
                  pl.BlockSpec((tk, 1), lambda i, k: (k, 0)),
                  pl.BlockSpec(memory_space=pltpu.MemorySpace.SMEM)],   # scalar bias
        out_specs=pl.BlockSpec((1, tm), lambda i, k: (0, i)),
        compiler_params=_cparams(("parallel", "arbitrary")),
    )(a_pad, support, b_vec)

    return scores_t[0, :n]


def _normalize_padded(a_pad, n_pad, hw):
    tm = _pick_tile(n_pad, hw["tm"])
    tk = _pick_tile(n_pad, hw["tk"])
    ts = _pick_tile(n_pad, hw["ts"])

    deg = _run_degree(a_pad, n_pad, tm, tk)
    dinv = lax.rsqrt(deg)                    # (n_pad, 1); > 0 thanks to the +I term
    dinv_row = dinv.reshape(1, n_pad)

    return pl.pallas_call(
        _scale_adj_kernel,
        out_shape=jax.ShapeDtypeStruct((n_pad, n_pad), jnp.float32),
        grid=(n_pad // ts, n_pad // ts),
        in_specs=[pl.BlockSpec((ts, ts), lambda i, j: (i, j)),
                  pl.BlockSpec((ts, 1), lambda i, j: (i, 0)),
                  pl.BlockSpec((1, ts), lambda i, j: (0, j))],
        out_specs=pl.BlockSpec((ts, ts), lambda i, j: (i, j)),
        input_output_aliases={0: 0},         # reuse the padded-A HBM buffer for L
        compiler_params=_cparams(("parallel", "parallel")),
    )(a_pad, dinv, dinv_row)


@jax.jit
def _normalize_dense(adj):
    n = adj.shape[0]
    hw = _hw_plan()
    n_pad = _choose_n_pad(n, hw["tk"])
    a_pad = _pad2d(jnp.asarray(adj, jnp.float32), n_pad, n_pad)
    return _normalize_padded(a_pad, n_pad, hw)[:n, :n]


def normalize_adjacency(adj_dense):
    """L = D^-0.5 (A+I) D^-0.5 on a dense float32 adjacency (two tiled Pallas passes)."""
    return _normalize_dense(jnp.asarray(adj_dense, jnp.float32))


@jax.jit
def _normalize_and_score_impl(adj_bin, x, w, b):
    n, d = x.shape
    hw = _hw_plan()
    n_pad = _choose_n_pad(n, hw["tk"])
    tm = _pick_tile(n_pad, hw["tm"])
    if n_pad // tm < 2:
        tm = _pick_tile(n_pad, max(_LANE, n_pad // 2))
    tk = _pick_tile(n_pad, hw["tk"])
    tkf = _pick_tile(n_pad, hw["tk_fused"])   # fused pass also writes L tiles -> smaller TK
    tb = _tb_for(d, n_pad, hw["tb"])

    a_pad = _pad2d(jnp.asarray(adj_bin, jnp.float32), n_pad, n_pad)
    x_pad = _pad2d(jnp.asarray(x, jnp.float32), n_pad, d)
    w_row = jnp.asarray(w, jnp.float32).reshape(1, d)
    b_val = jnp.asarray(b, jnp.float32).reshape(())

    deg = _run_degree(a_pad, n_pad, tm, tk)   # degrees of (A + I)
    dinv = lax.rsqrt(deg)                     # (n_pad, 1)
    dinv_row = dinv.reshape(1, n_pad)
    support = _run_support(x_pad, w_row, n_pad, tb)
    t = dinv * support                        # (n_pad, 1), O(N)

    l_pad, u = pl.pallas_call(
        _fused_norm_score_kernel,
        out_shape=(jax.ShapeDtypeStruct((n_pad, n_pad), jnp.float32),
                   jax.ShapeDtypeStruct((1, n_pad), jnp.float32)),
        grid=(n_pad // tm, n_pad // tkf),     # reduction axis last
        in_specs=[pl.BlockSpec((tkf, tm), lambda i, k: (k, i)),
                  pl.BlockSpec((tkf, 1), lambda i, k: (k, 0)),
                  pl.BlockSpec((1, tm), lambda i, k: (0, i)),
                  pl.BlockSpec((tkf, 1), lambda i, k: (k, 0))],
        out_specs=(pl.BlockSpec((tkf, tm), lambda i, k: (k, i)),
                   pl.BlockSpec((1, tm), lambda i, k: (0, i))),
        input_output_aliases={0: 0},          # L overwrites the padded-A buffer
        compiler_params=_cparams(("parallel", "arbitrary")),
    )(a_pad, dinv, dinv_row, t)

    # O(N) epilogue: scores = tanh(dinv * (A t + t) + b) == tanh(L @ (X @ w) + b)
    scores = jnp.tanh(dinv[:, 0] * (u[0, :] + t[:, 0]) + b_val)
    return l_pad[:n, :n], scores[:n]


def normalize_and_score(adj_binary, input_feature, w, b):
    """Fused fast path: one streaming pass over the raw (symmetric, self-loop-free) binary
    adjacency produces both L = D^-0.5 (A+I) D^-0.5 and tanh(L @ (X @ w) + b)."""
    return _normalize_and_score_impl(jnp.asarray(adj_binary, jnp.float32),
                                     jnp.asarray(input_feature, jnp.float32),
                                     jnp.asarray(w, jnp.float32),
                                     jnp.asarray(b, jnp.float32))


# ---------------------------------------------------------------------------
# Host-side glue (data-dependent shapes) + forward
# ---------------------------------------------------------------------------
def top_rank_np(attn_score, graph_indicator, keep_ratio):
    """Per-graph top-k node selection, mirroring top_rank(): keeps int(ratio * n_g) nodes
    per graph (can be 0 for very small graphs, same as the PyTorch reference)."""
    attn_score = np.asarray(attn_score)
    graph_indicator = np.asarray(graph_indicator)
    mask = np.zeros(attn_score.shape[0], dtype=bool)
    for gid in sorted(set(graph_indicator.tolist())):
        idx = np.nonzero(graph_indicator == gid)[0]
        keep = int(keep_ratio * len(idx))
        order = np.argsort(-attn_score[idx], kind="stable")   # descending sort
        mask[idx[order[:keep]]] = True
    return mask


def filter_adjacency(adjacency, keep_idx):
    """Dense equivalent of filter_adjacency(): stored-edge structure of L, drop self loops,
    keep selected nodes, renormalize.  All N^2 work stays on device."""
    adjacency = jnp.asarray(adjacency, jnp.float32)
    n = adjacency.shape[0]
    struct = (adjacency != 0).astype(jnp.float32)
    diag = jnp.arange(n)
    struct = struct.at[diag, diag].set(0.0)                    # maskout self loops
    keep_idx = jnp.asarray(keep_idx, jnp.int32)
    sub = jnp.take(jnp.take(struct, keep_idx, axis=0), keep_idx, axis=1)
    # TODO(synk): the reference returns a torch.sparse.FloatTensor; output stays dense here.
    return normalize_adjacency(sub)


def self_attention_pooling(adjacency, input_feature, graph_indicator, w, b, keep_ratio,
                           attn_score=None):
    """SelfAttentionPooling.forward.  `adjacency` is the dense normalized L.  If the score
    vector was already produced by the fused normalize_and_score() it can be passed in to
    skip the extra N^2 read of L."""
    adjacency = jnp.asarray(adjacency, jnp.float32)
    input_feature = jnp.asarray(input_feature, jnp.float32)
    graph_indicator = jnp.asarray(graph_indicator, jnp.int32)

    if attn_score is None:
        attn_score = attn_scores(adjacency, input_feature, w, b)      # (N,)  Pallas

    # Only the O(N) vectors visit the host (data-dependent keep counts / sort).
    mask = top_rank_np(jax.device_get(attn_score), jax.device_get(graph_indicator),
                       keep_ratio)
    keep_idx = jnp.asarray(np.nonzero(mask)[0], jnp.int32)

    # Tiny gathered broadcast multiply stays in XLA: a standalone pallas_call only added
    # launch overhead + an extra HBM round trip (previous perf review).
    hidden = (jnp.take(input_feature, keep_idx, axis=0)
              * jnp.take(attn_score, keep_idx)[:, None])
    mask_graph_indicator = jnp.take(graph_indicator, keep_idx)
    mask_adjacency = filter_adjacency(adjacency, keep_idx)
    return hidden, mask_graph_indicator, mask_adjacency


if __name__ == "__main__":
    N, D = 16, 32
    keep_ratio = 0.5

    key = jax.random.PRNGKey(0)
    k_adj, k_x, k_w = jax.random.split(key, 3)

    # two graphs of 8 nodes each (contiguous, as assumed by top_rank)
    graph_indicator = jnp.array([0] * 8 + [1] * 8, dtype=jnp.int32)

    # random symmetric binary adjacency, no self loops, no cross-graph edges
    raw = jax.random.uniform(k_adj, (N, N))
    adj_bin = ((raw + raw.T) > 1.2).astype(jnp.float32)
    adj_bin = adj_bin * (1.0 - jnp.eye(N, dtype=jnp.float32))
    same_graph = (graph_indicator[:, None] == graph_indicator[None, :]).astype(jnp.float32)
    adj_bin = adj_bin * same_graph

    input_feature = jax.random.normal(k_x, (N, D), dtype=jnp.float32)

    # GraphConvolution(input_dim=D, output_dim=1) parameters (kaiming_uniform_, zero bias)
    bound = float(np.sqrt(2.0) * np.sqrt(3.0))
    w = jax.random.uniform(k_w, (D, 1), minval=-bound, maxval=bound, dtype=jnp.float32)
    b = jnp.zeros((1,), dtype=jnp.float32)

    # ---- fused pipeline: L and attention scores in one streaming pass over A ----
    adjacency, scores_fused = normalize_and_score(adj_bin, input_feature, w, b)

    # ---- correctness spot-checks against a float64 numpy reference ----
    a64 = np.asarray(adj_bin, np.float64)
    eye = np.eye(N)
    dinv64 = 1.0 / np.sqrt((a64 + eye).sum(axis=1))
    l64 = dinv64[:, None] * (a64 + eye) * dinv64[None, :]
    np.testing.assert_allclose(np.asarray(adjacency), l64, rtol=1e-5, atol=1e-6)

    adjacency_sep = normalize_adjacency(adj_bin)             # two-pass path
    np.testing.assert_allclose(np.asarray(adjacency_sep), l64, rtol=1e-5, atol=1e-6)

    scores_ref = np.tanh(
        l64 @ (np.asarray(input_feature, np.float64) @ np.asarray(w, np.float64))
        + np.asarray(b, np.float64))[:, 0]
    np.testing.assert_allclose(np.asarray(scores_fused), scores_ref, rtol=1e-4, atol=1e-5)

    scores_unfused = attn_scores(adjacency, input_feature, w, b)   # module-faithful path
    np.testing.assert_allclose(np.asarray(scores_unfused), scores_ref, rtol=1e-4, atol=1e-5)
    np.testing.assert_allclose(np.asarray(scores_unfused), np.asarray(scores_fused),
                               rtol=1e-4, atol=1e-5)

    # ---- full forward (uses the fused scores; semantics identical to the module) ----
    hidden, mask_gi, mask_adj = self_attention_pooling(
        adjacency, input_feature, graph_indicator, w, b, keep_ratio,
        attn_score=scores_fused)
    jax.block_until_ready((hidden, mask_gi, mask_adj))

    assert hidden.shape == (int(keep_ratio * 8) * 2, D)
    assert mask_gi.shape == (hidden.shape[0],)
    assert mask_adj.shape == (hidden.shape[0], hidden.shape[0])
    print("KERNEL_OK")
</pallas_src>

<mosaic_0001>
module attributes {stable_mosaic.version = 11 : i64} {
  func.func @_support_kernel(%arg0: i32, %arg1: memref<128x32xf32, #tpu.memory_space<vmem>>, %arg2: memref<1x32xf32, #tpu.memory_space<vmem>>, %arg3: memref<128x1xf32, #tpu.memory_space<vmem>>) attributes {dimension_semantics = [#tpu.dimension_semantics<parallel>], iteration_bounds = array<i64: 1>, scalar_prefetch = 0 : i64, scratch_operands = 0 : i64, tpu.core_type = #tpu.core_type<tc>, window_params = [{transform_indices = @transform_0, window_bounds = array<i64: 128, 32>}, {pipeline_mode = #tpu.pipeline_mode<synchronous>, transform_indices = @transform_1, window_bounds = array<i64: 1, 32>}, {transform_indices = @transform_2, window_bounds = array<i64: 128, 1>}]} {
    %c0 = arith.constant 0 : index
    %c0_0 = arith.constant 0 : index
    %0 = vector.load %arg1[%c0, %c0_0] : memref<128x32xf32, #tpu.memory_space<vmem>>, vector<128x32xf32>
    %c0_1 = arith.constant 0 : index
    %c0_2 = arith.constant 0 : index
    %1 = vector.load %arg2[%c0_1, %c0_2] : memref<1x32xf32, #tpu.memory_space<vmem>>, vector<1x32xf32>
    %2 = vector.broadcast %1 : vector<1x32xf32> to vector<128x32xf32>
    %3 = arith.mulf %0, %2 : vector<128x32xf32>
    %cst = arith.constant dense<0.000000e+00> : vector<128xf32>
    %4 = vector.multi_reduction <add>, %3, %cst [1] : vector<128x32xf32> to vector<128xf32>
    %5 = vector.shape_cast %4 : vector<128xf32> to vector<128x1xf32>
    %c0_3 = arith.constant 0 : index
    %c0_4 = arith.constant 0 : index
    %6 = vector.load %arg3[%c0_3, %c0_4] : memref<128x1xf32, #tpu.memory_space<vmem>>, vector<128x1xf32>
    tpu.vector_store %arg3[%c0_3, %c0_4], %5 {strides = array<i32>} : memref<128x1xf32, #tpu.memory_space<vmem>>, vector<128x1xf32>,
    return
  }
  func.func @transform_0(%arg0: i32) -> (i32, i32) {
    %c0_i32 = arith.constant 0 : i32
    %c0_i32_0 = arith.constant 0 : i32
    return %arg0, %c0_i32 : i32, i32
  }
  func.func @transform_1(%arg0: i32) -> (i32, i32) {
    %c0_i32 = arith.constant 0 : i32
    %c0_i32_0 = arith.constant 0 : i32
    %c0_i32_1 = arith.constant 0 : i32
    return %c0_i32, %c0_i32_0 : i32, i32
  }
  func.func @transform_2(%arg0: i32) -> (i32, i32) {
    %c0_i32 = arith.constant 0 : i32
    %c0_i32_0 = arith.constant 0 : i32
    return %arg0, %c0_i32 : i32, i32
  }
}

module attributes {stable_mosaic.version = 11 : i64} {
  func.func @_degree_kernel(%arg0: i32, %arg1: i32, %arg2: memref<128x128xf32, #tpu.memory_space<vmem>>, %arg3: memref<128x1xf32, #tpu.memory_space<vmem>>) attributes {dimension_semantics = [#tpu.dimension_semantics<parallel>, #tpu.dimension_semantics<arbitrary>], iteration_bounds = array<i64: 1, 1>, scalar_prefetch = 0 : i64, scratch_operands = 0 : i64, tpu.core_type = #tpu.core_type<tc>, window_params = [{transform_indices = @transform_0, window_bounds = array<i64: 128, 128>}, {transform_indices = @transform_1, window_bounds = array<i64: 128, 1>}]} {
    %c0_i32 = arith.constant 0 : i32
    %0 = arith.cmpi eq, %arg1, %c0_i32 : i32
    %1 = arith.extui %0 : i1 to i32
    %c0_i32_0 = arith.constant 0 : i32
    %2 = arith.cmpi ne, %1, %c0_i32_0 : i32
    scf.if %2 {
      %cst_6 = arith.constant 1.000000e+00 : f32
      %9 = vector.broadcast %cst_6 : f32 to vector<128x1xf32>
      %c0_7 = arith.constant 0 : index
      %c0_8 = arith.constant 0 : index
      %10 = vector.load %arg3[%c0_7, %c0_8] : memref<128x1xf32, #tpu.memory_space<vmem>>, vector<128x1xf32>
      tpu.vector_store %arg3[%c0_7, %c0_8], %9 {strides = array<i32>} : memref<128x1xf32, #tpu.memory_space<vmem>>, vector<128x1xf32>,
    } else {
    }
    %c0 = arith.constant 0 : index
    %c0_1 = arith.constant 0 : index
    %3 = vector.load %arg3[%c0, %c0_1] : memref<128x1xf32, #tpu.memory_space<vmem>>, vector<128x1xf32>
    %c0_2 = arith.constant 0 : index
    %c0_3 = arith.constant 0 : index
    %4 = vector.load %arg2[%c0_2, %c0_3] : memref<128x128xf32, #tpu.memory_space<vmem>>, vector<128x128xf32>
    %cst = arith.constant dense<0.000000e+00> : vector<128xf32>
    %5 = vector.multi_reduction <add>, %4, %cst [1] : vector<128x128xf32> to vector<128xf32>
    %6 = vector.shape_cast %5 : vector<128xf32> to vector<128x1xf32>
    %7 = arith.addf %3, %6 : vector<128x1xf32>
    %c0_4 = arith.constant 0 : index
    %c0_5 = arith.constant 0 : index
    %8 = vector.load %arg3[%c0_4, %c0_5] : memref<128x1xf32, #tpu.memory_space<vmem>>, vector<128x1xf32>
    tpu.vector_store %arg3[%c0_4, %c0_5], %7 {strides = array<i32>} : memref<128x1xf32, #tpu.memory_space<vmem>>, vector<128x1xf32>,
    return
  }
  func.func @transform_0(%arg0: i32, %arg1: i32) -> (i32, i32) {
    %c0_i32 = arith.constant 0 : i32
    return %arg0, %arg1 : i32, i32
  }
  func.func @transform_1(%arg0: i32, %arg1: i32) -> (i32, i32) {
    %c0_i32 = arith.constant 0 : i32
    %c0_i32_0 = arith.constant 0 : i32
    return %arg0, %c0_i32 : i32, i32
  }
}

module attributes {stable_mosaic.version = 11 : i64} {
  func.func @_fused_norm_score_kernel(%arg0: i32, %arg1: i32, %arg2: memref<128x128xf32, #tpu.memory_space<vmem>>, %arg3: memref<128x1xf32, #tpu.memory_space<vmem>>, %arg4: memref<1x128xf32, #tpu.memory_space<vmem>>, %arg5: memref<128x1xf32, #tpu.memory_space<vmem>>, %arg6: memref<128x128xf32, #tpu.memory_space<vmem>>, %arg7: memref<1x128xf32, #tpu.memory_space<vmem>>) attributes {dimension_semantics = [#tpu.dimension_semantics<parallel>, #tpu.dimension_semantics<arbitrary>], iteration_bounds = array<i64: 1, 1>, scalar_prefetch = 0 : i64, scratch_operands = 0 : i64, tpu.core_type = #tpu.core_type<tc>, window_params = [{transform_indices = @transform_0, window_bounds = array<i64: 128, 128>}, {transform_indices = @transform_1, window_bounds = array<i64: 128, 1>}, {transform_indices = @transform_2, window_bounds = array<i64: 1, 128>}, {transform_indices = @transform_3, window_bounds = array<i64: 128, 1>}, {transform_indices = @transform_4, window_bounds = array<i64: 128, 128>}, {transform_indices = @transform_5, window_bounds = array<i64: 1, 128>}]} {
    %c0_i32 = arith.constant 0 : i32
    %0 = arith.cmpi eq, %arg1, %c0_i32 : i32
    %1 = arith.extui %0 : i1 to i32
    %c0_i32_0 = arith.constant 0 : i32
    %2 = arith.cmpi ne, %1, %c0_i32_0 : i32
    scf.if %2 {
      %cst_18 = arith.constant 0.000000e+00 : f32
      %28 = vector.broadcast %cst_18 : f32 to vector<1x128xf32>
      %c0_19 = arith.constant 0 : index
      %c0_20 = arith.constant 0 : index
      %29 = vector.load %arg7[%c0_19, %c0_20] : memref<1x128xf32, #tpu.memory_space<vmem>>, vector<1x128xf32>
      tpu.vector_store %arg7[%c0_19, %c0_20], %28 {strides = array<i32>} : memref<1x128xf32, #tpu.memory_space<vmem>>, vector<1x128xf32>,
    } else {
    }
    %c0 = arith.constant 0 : index
    %c0_1 = arith.constant 0 : index
    %3 = vector.load %arg2[%c0, %c0_1] : memref<128x128xf32, #tpu.memory_space<vmem>>, vector<128x128xf32>
    %c0_2 = arith.constant 0 : index
    %c0_3 = arith.constant 0 : index
    %4 = vector.load %arg7[%c0_2, %c0_3] : memref<1x128xf32, #tpu.memory_space<vmem>>, vector<1x128xf32>
    %c0_4 = arith.constant 0 : index
    %c0_5 = arith.constant 0 : index
    %5 = vector.load %arg5[%c0_4, %c0_5] : memref<128x1xf32, #tpu.memory_space<vmem>>, vector<128x1xf32>
    %6 = vector.broadcast %5 : vector<128x1xf32> to vector<128x128xf32>
    %7 = arith.mulf %3, %6 : vector<128x128xf32>
    %cst = arith.constant dense<0.000000e+00> : vector<128xf32>
    %8 = vector.multi_reduction <add>, %7, %cst [0] : vector<128x128xf32> to vector<128xf32>
    %9 = vector.shape_cast %8 : vector<128xf32> to vector<1x128xf32>
    %10 = arith.addf %4, %9 : vector<1x128xf32>
    %c0_6 = arith.constant 0 : index
    %c0_7 = arith.constant 0 : index
    %11 = vector.load %arg7[%c0_6, %c0_7] : memref<1x128xf32, #tpu.memory_space<vmem>>, vector<1x128xf32>
    tpu.vector_store %arg7[%c0_6, %c0_7], %10 {strides = array<i32>} : memref<1x128xf32, #tpu.memory_space<vmem>>, vector<1x128xf32>,
    %c0_8 = arith.constant 0 : index
    %c0_9 = arith.constant 0 : index
    %12 = vector.load %arg3[%c0_8, %c0_9] : memref<128x1xf32, #tpu.memory_space<vmem>>, vector<128x1xf32>
    %13 = vector.broadcast %12 : vector<128x1xf32> to vector<128x128xf32>
    %14 = arith.mulf %13, %3 : vector<128x128xf32>
    %c0_10 = arith.constant 0 : index
    %c0_11 = arith.constant 0 : index
    %15 = vector.load %arg4[%c0_10, %c0_11] : memref<1x128xf32, #tpu.memory_space<vmem>>, vector<1x128xf32>
    %16 = vector.broadcast %15 : vector<1x128xf32> to vector<128x128xf32>
    %17 = arith.mulf %14, %16 : vector<128x128xf32>
    %c0_12 = arith.constant 0 : index
    %c0_13 = arith.constant 0 : index
    %18 = vector.load %arg6[%c0_12, %c0_13] : memref<128x128xf32, #tpu.memory_space<vmem>>, vector<128x128xf32>
    tpu.vector_store %arg6[%c0_12, %c0_13], %17 {strides = array<i32>} : memref<128x128xf32, #tpu.memory_space<vmem>>, vector<128x128xf32>,
    %c128_i32 = arith.constant 128 : i32
    %19 = arith.muli %arg1, %c128_i32 : i32
    %c128_i32_14 = arith.constant 128 : i32
    %20 = arith.muli %arg0, %c128_i32_14 : i32
    %c128_i32_15 = arith.constant 128 : i32
    %21 = arith.addi %20, %c128_i32_15 : i32
    %22 = arith.cmpi slt, %19, %21 : i32
    %c128_i32_16 = arith.constant 128 : i32
    %23 = arith.addi %19, %c128_i32_16 : i32
    %24 = arith.cmpi slt, %20, %23 : i32
    %25 = arith.andi %22, %24 : i1
    %26 = arith.extui %25 : i1 to i32
    %c0_i32_17 = arith.constant 0 : i32
    %27 = arith.cmpi ne, %26, %c0_i32_17 : i32
    scf.if %27 {
      %28 = tpu.iota {dimensions = array<i32: 0>} : vector<128x128xi32>
      %29 = vector.broadcast %19 : i32 to vector<128x128xi32>
      %30 = arith.addi %28, %29 : vector<128x128xi32>
      %31 = tpu.iota {dimensions = array<i32: 1>} : vector<128x128xi32>
      %32 = vector.broadcast %20 : i32 to vector<128x128xi32>
      %33 = arith.addi %31, %32 : vector<128x128xi32>
      %c0_18 = arith.constant 0 : index
      %c0_19 = arith.constant 0 : index
      %34 = vector.load %arg6[%c0_18, %c0_19] : memref<128x128xf32, #tpu.memory_space<vmem>>, vector<128x128xf32>
      %35 = arith.cmpi eq, %30, %33 : vector<128x128xi32>
      %36 = arith.extui %35 : vector<128x128xi1> to vector<128x128xi32>
      %37 = arith.sitofp %36 : vector<128x128xi32> to vector<128x128xf32>
      %c0_20 = arith.constant 0 : index
      %c0_21 = arith.constant 0 : index
      %38 = vector.load %arg3[%c0_20, %c0_21] : memref<128x1xf32, #tpu.memory_space<vmem>>, vector<128x1xf32>
      %c0_22 = arith.constant 0 : index
      %c0_23 = arith.constant 0 : index
      %39 = vector.load %arg4[%c0_22, %c0_23] : memref<1x128xf32, #tpu.memory_space<vmem>>, vector<1x128xf32>
      %40 = vector.broadcast %38 : vector<128x1xf32> to vector<128x128xf32>
      %41 = vector.broadcast %39 : vector<1x128xf32> to vector<128x128xf32>
      %42 = arith.mulf %40, %41 : vector<128x128xf32>
      %43 = arith.mulf %37, %42 : vector<128x128xf32>
      %44 = arith.addf %34, %43 : vector<128x128xf32>
      %c0_24 = arith.constant 0 : index
      %c0_25 = arith.constant 0 : index
      %45 = vector.load %arg6[%c0_24, %c0_25] : memref<128x128xf32, #tpu.memory_space<vmem>>, vector<128x128xf32>
      tpu.vector_store %arg6[%c0_24, %c0_25], %44 {strides = array<i32>} : memref<128x128xf32, #tpu.memory_space<vmem>>, vector<128x128xf32>,
    } else {
    }
    return
  }
  func.func @transform_0(%arg0: i32, %arg1: i32) -> (i32, i32) {
    %c0_i32 = arith.constant 0 : i32
    return %arg1, %arg0 : i32, i32
  }
  func.func @transform_1(%arg0: i32, %arg1: i32) -> (i32, i32) {
    %c0_i32 = arith.constant 0 : i32
    %c0_i32_0 = arith.constant 0 : i32
    return %arg1, %c0_i32 : i32, i32
  }
  func.func @transform_2(%arg0: i32, %arg1: i32) -> (i32, i32) {
    %c0_i32 = arith.constant 0 : i32
    %c0_i32_0 = arith.constant 0 : i32
    return %c0_i32, %arg0 : i32, i32
  }
  func.func @transform_3(%arg0: i32, %arg1: i32) -> (i32, i32) {
    %c0_i32 = arith.constant 0 : i32
    %c0_i32_0 = arith.constant 0 : i32
    return %arg1, %c0_i32 : i32, i32
  }
  func.func @transform_4(%arg0: i32, %arg1: i32) -> (i32, i32) {
    %c0_i32 = arith.constant 0 : i32
    return %arg1, %arg0 : i32, i32
  }
  func.func @transform_5(%arg0: i32, %arg1: i32) -> (i32, i32) {
    %c0_i32 = arith.constant 0 : i32
    %c0_i32_0 = arith.constant 0 : i32
    return %c0_i32, %arg0 : i32, i32
  }
}

</mosaic_0001>

<llo_original>
// kernel: _normalize_and_score_impl.4
$region0: #{_normalize_and_score_impl.4}
  #allocation0 [shape = 'u32[]', space=smem, size = 0x4, offset = 0x4, fixed_abs, tag = 'smem constant byte address 0x4 - core index']
  #allocation1 [shape = 'u32[144,128]{1,0:T(1,128)}', space=vmem, size = 0x12000, scoped, tag = 'internal scratch']
  %s0 = inlined_call_operand.hbm [shape: f32[128,32], index: 0, kind: input, shape index: {}]
  %s1 = inlined_call_operand.hbm [shape: f32[1,32], index: 1, kind: input, shape index: {}]
  %s2 = inlined_call_operand.hbm [shape: f32[128,1], index: 2, kind: output, shape index: {}]
  %s3 = sld [smem:[#allocation0]]
  $region26: #{_normalize_and_score_impl.4} parent=0
    _
  %s5 = ssub.s32 1, %s3
  %s6 = scalar_select 0, %s5, %s3
  $region1: #{_normalize_and_score_impl.4} parent=0
    #allocation2 [shape = 'u8[65536]{0}', space=vmem, size = 0x10000, scoped, tag = 'input window, operand 0, single buffered']
    #allocation3 [shape = 's32[1]{0}', space=sflag, size = 0x4, scoped, tag = 'scoped memory for _normalize_and_score_impl.4']
    #allocation4 [shape = 's32[1]{0}', space=sflag, size = 0x4, scoped, tag = 'scoped memory for _normalize_and_score_impl.4']
    #allocation5 [shape = 'u8[512]{0}', space=vmem, size = 0x400, scoped, tag = 'input window, operand 1, single buffered']
    #allocation6 [shape = 's32[1]{0}', space=sflag, size = 0x4, scoped, tag = 'scoped memory for _normalize_and_score_impl.4']
    #allocation7 [shape = 'u8[65536]{0}', space=vmem, size = 0x10000, scoped, tag = 'output window, operand 0, single buffered']
    %7 = vsyncpa [#allocation3], 0
    %8 = vsyncpa [#allocation6], 0
    %9 = vsyncpa [#allocation4], 0
    // Predicated region
    $region2: #{_normalize_and_score_impl.4} parent=1 // pred_check
      _
    $region3: #{_normalize_and_score_impl.4} parent=1 // pred_check_branch
      %11 = sbr.rel (0) target = $region5
    $region4: #{_normalize_and_score_impl.4} parent=1 // pred_region
      %s13 = ssub.s32 2048, 2048
      %14 = vsyncadd [#allocation3], %s13
      %s15 = sshll.u32 [#allocation2], 4
      %s16 = int_to_ptr.vmem [resolvable:$true] %s15
      %21 = dma.hbm_to_vmem [thread:$0]  %s0, 2048, %s16, [#allocation3], 128, 128, 8
    $region5: #{_normalize_and_score_impl.4} parent=1 // pred_fallthru
      _
    // Predicated region
    $region6: #{_normalize_and_score_impl.4} parent=1 // pred_check
      _
    $region7: #{_normalize_and_score_impl.4} parent=1 // pred_check_branch
      %23 = sbr.rel (0) target = $region9
    $region8: #{_normalize_and_score_impl.4} parent=1 // pred_region
      %s25 = ssub.s32 16, 16
      %26 = vsyncadd [#allocation6], %s25
      %s28 = sshll.u32 [#allocation5], 4
      %s29 = int_to_ptr.vmem [resolvable:$true] %s28
      %31 = dma.hbm_to_vmem [thread:$0]  %s1, 16, %s29, [#allocation6]
    $region9: #{_normalize_and_score_impl.4} parent=1 // pred_fallthru
      _
    // Predicated region
    $region10: #{_normalize_and_score_impl.4} parent=1 // pred_check
      _
    $region11: #{_normalize_and_score_impl.4} parent=1 // pred_check_branch
      %33 = sbr.rel (0) target = $region13
    $region12: #{_normalize_and_score_impl.4} parent=1 // pred_region
      %34 = dma.done [#allocation3], 2048
    $region13: #{_normalize_and_score_impl.4} parent=1 // pred_fallthru
      _
    // Predicated region
    $region14: #{_normalize_and_score_impl.4} parent=1 // pred_check
      _
    $region15: #{_normalize_and_score_impl.4} parent=1 // pred_check_branch
      %36 = sbr.rel (0) target = $region17
    $region16: #{_normalize_and_score_impl.4} parent=1 // pred_region
      %37 = dma.done [#allocation6], 16
    $region17: #{_normalize_and_score_impl.4} parent=1 // pred_fallthru
      _
    %v38 = vld [vmem:[#allocation2] sm:$0xff]
    %v39 = vld [vmem:[#allocation2 + $0x8] sm:$0xff]
    %v40 = vld [vmem:[#allocation2 + $0x10] sm:$0xff]
    %v41 = vld [vmem:[#allocation2 + $0x18] sm:$0xff]
    %v42 = vld [vmem:[#allocation2 + $0x20] sm:$0xff]
    %v43 = vld [vmem:[#allocation2 + $0x28] sm:$0xff]
    %v44 = vld [vmem:[#allocation2 + $0x30] sm:$0xff]
    %v45 = vld [vmem:[#allocation2 + $0x38] sm:$0xff]
    %v46 = vld [vmem:[#allocation2 + $0x40] sm:$0xff]
    %v47 = vld [vmem:[#allocation2 + $0x48] sm:$0xff]
    %v48 = vld [vmem:[#allocation2 + $0x50] sm:$0xff]
    %v49 = vld [vmem:[#allocation2 + $0x58] sm:$0xff]
    %v50 = vld [vmem:[#allocation2 + $0x60] sm:$0xff]
    %v51 = vld [vmem:[#allocation2 + $0x68] sm:$0xff]
    %v52 = vld [vmem:[#allocation2 + $0x70] sm:$0xff]
    %v53 = vld [vmem:[#allocation2 + $0x78] sm:$0xff]
    %v54 = vld [vmem:[#allocation5] sm:$0x1]
    %v56 = vlaneseq
    %v57 = vshrl.u32 %v56, 7
    %v58 = vsub.s32 0, %v57
    %v59 = vrot.slane %v54, %v58
    %v61 = vmul.f32 %v38, %v59
    %v62 = vmul.f32 %v39, %v59
    %v63 = vmul.f32 %v40, %v59
    %v64 = vmul.f32 %v41, %v59
    %v65 = vmul.f32 %v42, %v59
    %v66 = vmul.f32 %v43, %v59
    %v67 = vmul.f32 %v44, %v59
    %v68 = vmul.f32 %v45, %v59
    %v69 = vmul.f32 %v46, %v59
    %v70 = vmul.f32 %v47, %v59
    %v71 = vmul.f32 %v48, %v59
    %v72 = vmul.f32 %v49, %v59
    %v73 = vmul.f32 %v50, %v59
    %v74 = vmul.f32 %v51, %v59
    %v75 = vmul.f32 %v52, %v59
    %v76 = vmul.f32 %v53, %v59
    %vm77 = vcmask 261120
    %v78 = vsel %vm77, %v61, 0.0
    %79 = vadd.xlane.f32.xlu0 %v78
    %v80 = vpop.xlane.xlu0 %79
    %v81 = vsel %vm77, %v62, 0.0
    %82 = vadd.xlane.f32.xlu0 %v81
    %v83 = vpop.xlane.xlu0 %82
    %v84 = vsel %vm77, %v63, 0.0
    %85 = vadd.xlane.f32.xlu0 %v84
    %v86 = vpop.xlane.xlu0 %85
    %v87 = vsel %vm77, %v64, 0.0
    %88 = vadd.xlane.f32.xlu0 %v87
    %v89 = vpop.xlane.xlu0 %88
    %v90 = vsel %vm77, %v65, 0.0
    %91 = vadd.xlane.f32.xlu0 %v90
    %v92 = vpop.xlane.xlu0 %91
    %v93 = vsel %vm77, %v66, 0.0
    %94 = vadd.xlane.f32.xlu0 %v93
    %v95 = vpop.xlane.xlu0 %94
    %v96 = vsel %vm77, %v67, 0.0
    %97 = vadd.xlane.f32.xlu0 %v96
    %v98 = vpop.xlane.xlu0 %97
    %v99 = vsel %vm77, %v68, 0.0
    %100 = vadd.xlane.f32.xlu0 %v99
    %v101 = vpop.xlane.xlu0 %100
    %v102 = vsel %vm77, %v69, 0.0
    %103 = vadd.xlane.f32.xlu0 %v102
    %v104 = vpop.xlane.xlu0 %103
    %v105 = vsel %vm77, %v70, 0.0
    %106 = vadd.xlane.f32.xlu0 %v105
    %v107 = vpop.xlane.xlu0 %106
    %v108 = vsel %vm77, %v71, 0.0
    %109 = vadd.xlane.f32.xlu0 %v108
    %v110 = vpop.xlane.xlu0 %109
    %v111 = vsel %vm77, %v72, 0.0
    %112 = vadd.xlane.f32.xlu0 %v111
    %v113 = vpop.xlane.xlu0 %112
    %v114 = vsel %vm77, %v73, 0.0
    %115 = vadd.xlane.f32.xlu0 %v114
    %v116 = vpop.xlane.xlu0 %115
    %v117 = vsel %vm77, %v74, 0.0
    %118 = vadd.xlane.f32.xlu0 %v117
    %v119 = vpop.xlane.xlu0 %118
    %v120 = vsel %vm77, %v75, 0.0
    %121 = vadd.xlane.f32.xlu0 %v120
    %v122 = vpop.xlane.xlu0 %121
    %v123 = vsel %vm77, %v76, 0.0
    %124 = vadd.xlane.f32.xlu0 %v123
    %v125 = vpop.xlane.xlu0 %124
    %vm126 = vcmask 7168
    %127 = vst.msk [vmem:[#allocation7] sm:$0xff] %vm126, %v80
    %128 = vst.msk [vmem:[#allocation7 + $0x8] sm:$0xff] %vm126, %v83
    %129 = vst.msk [vmem:[#allocation7 + $0x10] sm:$0xff] %vm126, %v86
    %130 = vst.msk [vmem:[#allocation7 + $0x18] sm:$0xff] %vm126, %v89
    %131 = vst.msk [vmem:[#allocation7 + $0x20] sm:$0xff] %vm126, %v92
    %132 = vst.msk [vmem:[#allocation7 + $0x28] sm:$0xff] %vm126, %v95
    %133 = vst.msk [vmem:[#allocation7 + $0x30] sm:$0xff] %vm126, %v98
    %134 = vst.msk [vmem:[#allocation7 + $0x38] sm:$0xff] %vm126, %v101
    %135 = vst.msk [vmem:[#allocation7 + $0x40] sm:$0xff] %vm126, %v104
    %136 = vst.msk [vmem:[#allocation7 + $0x48] sm:$0xff] %vm126, %v107
    %137 = vst.msk [vmem:[#allocation7 + $0x50] sm:$0xff] %vm126, %v110
    %138 = vst.msk [vmem:[#allocation7 + $0x58] sm:$0xff] %vm126, %v113
    %139 = vst.msk [vmem:[#allocation7 + $0x60] sm:$0xff] %vm126, %v116
    %140 = vst.msk [vmem:[#allocation7 + $0x68] sm:$0xff] %vm126, %v119
    %141 = vst.msk [vmem:[#allocation7 + $0x70] sm:$0xff] %vm126, %v122
    %142 = vst.msk [vmem:[#allocation7 + $0x78] sm:$0xff] %vm126, %v125
    // Predicated region
    $region18: #{_normalize_and_score_impl.4} parent=1 // pred_check
      _
    $region19: #{_normalize_and_score_impl.4} parent=1 // pred_check_branch
      %144 = sbr.rel (0) target = $region21
    $region20: #{_normalize_and_score_impl.4} parent=1 // pred_region
      %s146 = ssub.s32 2048, 2048
      %147 = vsyncadd [#allocation4], %s146
      %s148 = sshll.u32 [#allocation7], 4
      %s149 = int_to_ptr.vmem [resolvable:$true] %s148
      %154 = dma.vmem_to_hbm [thread:$0]  %s149, 2048, %s2, [#allocation4], 128, 128, 8
    $region21: #{_normalize_and_score_impl.4} parent=1 // pred_fallthru
      _
    // Predicated region
    $region22: #{_normalize_and_score_impl.4} parent=1 // pred_check
      _
    $region23: #{_normalize_and_score_impl.4} parent=1 // pred_check_branch
      %156 = sbr.rel (0) target = $region25
    $region24: #{_normalize_and_score_impl.4} parent=1 // pred_region
      %157 = dma.done [#allocation4], 2048
    $region25: #{_normalize_and_score_impl.4} parent=1 // pred_fallthru
      _
    %158 = vsyncpa [#allocation3], 1
    %159 = vsyncpa [#allocation6], 1
    %160 = vsyncpa [#allocation4], 1

// kernel: _normalize_and_score_impl.3
$region0: #{_normalize_and_score_impl.3}
  #allocation0 [shape = 'u32[]', space=smem, size = 0x4, offset = 0x4, fixed_abs, tag = 'smem constant byte address 0x4 - core index']
  #allocation1 [shape = 'u32[144,128]{1,0:T(1,128)}', space=vmem, size = 0x12000, scoped, tag = 'internal scratch']
  %s0 = inlined_call_operand.hbm [shape: f32[128,128], index: 0, kind: input, shape index: {}]
  %s1 = inlined_call_operand.hbm [shape: f32[128,1], index: 1, kind: output, shape index: {}]
  %s2 = sld [smem:[#allocation0]]
  $region22: #{_normalize_and_score_impl.3} parent=0
    _
  %s4 = ssub.s32 1, %s2
  %s5 = scalar_select 0, %s4, %s2
  $region1: #{_normalize_and_score_impl.3} parent=0
    #allocation2 [shape = 'u8[65536]{0}', space=vmem, size = 0x10000, scoped, tag = 'input window, operand 0, single buffered']
    #allocation3 [shape = 's32[1]{0}', space=sflag, size = 0x4, scoped, tag = 'scoped memory for _normalize_and_score_impl.3']
    #allocation4 [shape = 's32[1]{0}', space=sflag, size = 0x4, scoped, tag = 'scoped memory for _normalize_and_score_impl.3']
    #allocation5 [shape = 'u8[65536]{0}', space=vmem, size = 0x10000, scoped, tag = 'output window, operand 0, single buffered']
    %6 = vsyncpa [#allocation3], 0
    %7 = vsyncpa [#allocation4], 0
    // Predicated region
    $region2: #{_normalize_and_score_impl.3} parent=1 // pred_check
      _
    $region3: #{_normalize_and_score_impl.3} parent=1 // pred_check_branch
      %9 = sbr.rel (0) target = $region5
    $region4: #{_normalize_and_score_impl.3} parent=1 // pred_region
      %s11 = ssub.s32 2048, 2048
      %12 = vsyncadd [#allocation3], %s11
      %s13 = sshll.u32 [#allocation2], 4
      %s14 = int_to_ptr.vmem [resolvable:$true] %s13
      %19 = dma.hbm_to_vmem [thread:$0]  %s0, 2048, %s14, [#allocation3], 128, 128, 8
    $region5: #{_normalize_and_score_impl.3} parent=1 // pred_fallthru
      _
    // Predicated region
    $region6: #{_normalize_and_score_impl.3} parent=1 // pred_check
      _
    $region7: #{_normalize_and_score_impl.3} parent=1 // pred_check_branch
      %21 = sbr.rel (0) target = $region9
    $region8: #{_normalize_and_score_impl.3} parent=1 // pred_region
      %22 = dma.done [#allocation3], 2048
    $region9: #{_normalize_and_score_impl.3} parent=1 // pred_fallthru
      _
    %p23 = scmp.eq.s32.totalorder 0, 0
    // Predicated region
    $region10: #{_normalize_and_score_impl.3} parent=1 // pred_check
      %p24 = pneg %p23
    $region11: #{_normalize_and_score_impl.3} parent=1 // pred_check_branch
      %26 = sbr.rel (%p24) target = $region13
    $region12: #{_normalize_and_score_impl.3} parent=1 // pred_region
      %vm27 = vcmask 7168
      %28 = vst.msk [vmem:[#allocation5] sm:$0xff] %vm27, 1.0
      %29 = vst.msk [vmem:[#allocation5 + $0x8] sm:$0xff] %vm27, 1.0
      %30 = vst.msk [vmem:[#allocation5 + $0x10] sm:$0xff] %vm27, 1.0
      %31 = vst.msk [vmem:[#allocation5 + $0x18] sm:$0xff] %vm27, 1.0
      %32 = vst.msk [vmem:[#allocation5 + $0x20] sm:$0xff] %vm27, 1.0
      %33 = vst.msk [vmem:[#allocation5 + $0x28] sm:$0xff] %vm27, 1.0
      %34 = vst.msk [vmem:[#allocation5 + $0x30] sm:$0xff] %vm27, 1.0
      %35 = vst.msk [vmem:[#allocation5 + $0x38] sm:$0xff] %vm27, 1.0
      %36 = vst.msk [vmem:[#allocation5 + $0x40] sm:$0xff] %vm27, 1.0
      %37 = vst.msk [vmem:[#allocation5 + $0x48] sm:$0xff] %vm27, 1.0
      %38 = vst.msk [vmem:[#allocation5 + $0x50] sm:$0xff] %vm27, 1.0
      %39 = vst.msk [vmem:[#allocation5 + $0x58] sm:$0xff] %vm27, 1.0
      %40 = vst.msk [vmem:[#allocation5 + $0x60] sm:$0xff] %vm27, 1.0
      %41 = vst.msk [vmem:[#allocation5 + $0x68] sm:$0xff] %vm27, 1.0
      %42 = vst.msk [vmem:[#allocation5 + $0x70] sm:$0xff] %vm27, 1.0
      %43 = vst.msk [vmem:[#allocation5 + $0x78] sm:$0xff] %vm27, 1.0
    $region13: #{_normalize_and_score_impl.3} parent=1 // pred_fallthru
      _
    %v44 = vld [vmem:[#allocation5] sm:$0xff]
    %v45 = vld [vmem:[#allocation5 + $0x8] sm:$0xff]
    %v46 = vld [vmem:[#allocation5 + $0x10] sm:$0xff]
    %v47 = vld [vmem:[#allocation5 + $0x18] sm:$0xff]
    %v48 = vld [vmem:[#allocation5 + $0x20] sm:$0xff]
    %v49 = vld [vmem:[#allocation5 + $0x28] sm:$0xff]
    %v50 = vld [vmem:[#allocation5 + $0x30] sm:$0xff]
    %v51 = vld [vmem:[#allocation5 + $0x38] sm:$0xff]
    %v52 = vld [vmem:[#allocation5 + $0x40] sm:$0xff]
    %v53 = vld [vmem:[#allocation5 + $0x48] sm:$0xff]
    %v54 = vld [vmem:[#allocation5 + $0x50] sm:$0xff]
    %v55 = vld [vmem:[#allocation5 + $0x58] sm:$0xff]
    %v56 = vld [vmem:[#allocation5 + $0x60] sm:$0xff]
    %v57 = vld [vmem:[#allocation5 + $0x68] sm:$0xff]
    %v58 = vld [vmem:[#allocation5 + $0x70] sm:$0xff]
    %v59 = vld [vmem:[#allocation5 + $0x78] sm:$0xff]
    %v60 = vld [vmem:[#allocation2] sm:$0xff]
    %v61 = vld [vmem:[#allocation2 + $0x8] sm:$0xff]
    %v62 = vld [vmem:[#allocation2 + $0x10] sm:$0xff]
    %v63 = vld [vmem:[#allocation2 + $0x18] sm:$0xff]
    %v64 = vld [vmem:[#allocation2 + $0x20] sm:$0xff]
    %v65 = vld [vmem:[#allocation2 + $0x28] sm:$0xff]
    %v66 = vld [vmem:[#allocation2 + $0x30] sm:$0xff]
    %v67 = vld [vmem:[#allocation2 + $0x38] sm:$0xff]
    %v68 = vld [vmem:[#allocation2 + $0x40] sm:$0xff]
    %v69 = vld [vmem:[#allocation2 + $0x48] sm:$0xff]
    %v70 = vld [vmem:[#allocation2 + $0x50] sm:$0xff]
    %v71 = vld [vmem:[#allocation2 + $0x58] sm:$0xff]
    %v72 = vld [vmem:[#allocation2 + $0x60] sm:$0xff]
    %v73 = vld [vmem:[#allocation2 + $0x68] sm:$0xff]
    %v74 = vld [vmem:[#allocation2 + $0x70] sm:$0xff]
    %v75 = vld [vmem:[#allocation2 + $0x78] sm:$0xff]
    %76 = vadd.xlane.f32.xlu0 %v60
    %v77 = vpop.xlane.xlu0 %76
    %78 = vadd.xlane.f32.xlu0 %v61
    %v79 = vpop.xlane.xlu0 %78
    %80 = vadd.xlane.f32.xlu0 %v62
    %v81 = vpop.xlane.xlu0 %80
    %82 = vadd.xlane.f32.xlu0 %v63
    %v83 = vpop.xlane.xlu0 %82
    %84 = vadd.xlane.f32.xlu0 %v64
    %v85 = vpop.xlane.xlu0 %84
    %86 = vadd.xlane.f32.xlu0 %v65
    %v87 = vpop.xlane.xlu0 %86
    %88 = vadd.xlane.f32.xlu0 %v66
    %v89 = vpop.xlane.xlu0 %88
    %90 = vadd.xlane.f32.xlu0 %v67
    %v91 = vpop.xlane.xlu0 %90
    %92 = vadd.xlane.f32.xlu0 %v68
    %v93 = vpop.xlane.xlu0 %92
    %94 = vadd.xlane.f32.xlu0 %v69
    %v95 = vpop.xlane.xlu0 %94
    %96 = vadd.xlane.f32.xlu0 %v70
    %v97 = vpop.xlane.xlu0 %96
    %98 = vadd.xlane.f32.xlu0 %v71
    %v99 = vpop.xlane.xlu0 %98
    %100 = vadd.xlane.f32.xlu0 %v72
    %v101 = vpop.xlane.xlu0 %100
    %102 = vadd.xlane.f32.xlu0 %v73
    %v103 = vpop.xlane.xlu0 %102
    %104 = vadd.xlane.f32.xlu0 %v74
    %v105 = vpop.xlane.xlu0 %104
    %106 = vadd.xlane.f32.xlu0 %v75
    %v107 = vpop.xlane.xlu0 %106
    %v108 = vadd.f32 %v44, %v77
    %v109 = vadd.f32 %v45, %v79
    %v110 = vadd.f32 %v46, %v81
    %v111 = vadd.f32 %v47, %v83
    %v112 = vadd.f32 %v48, %v85
    %v113 = vadd.f32 %v49, %v87
    %v114 = vadd.f32 %v50, %v89
    %v115 = vadd.f32 %v51, %v91
    %v116 = vadd.f32 %v52, %v93
    %v117 = vadd.f32 %v53, %v95
    %v118 = vadd.f32 %v54, %v97
    %v119 = vadd.f32 %v55, %v99
    %v120 = vadd.f32 %v56, %v101
    %v121 = vadd.f32 %v57, %v103
    %v122 = vadd.f32 %v58, %v105
    %v123 = vadd.f32 %v59, %v107
    %vm124 = vcmask 7168
    %125 = vst.msk [vmem:[#allocation5] sm:$0xff] %vm124, %v108
    %126 = vst.msk [vmem:[#allocation5 + $0x8] sm:$0xff] %vm124, %v109
    %127 = vst.msk [vmem:[#allocation5 + $0x10] sm:$0xff] %vm124, %v110
    %128 = vst.msk [vmem:[#allocation5 + $0x18] sm:$0xff] %vm124, %v111
    %129 = vst.msk [vmem:[#allocation5 + $0x20] sm:$0xff] %vm124, %v112
    %130 = vst.msk [vmem:[#allocation5 + $0x28] sm:$0xff] %vm124, %v113
    %131 = vst.msk [vmem:[#allocation5 + $0x30] sm:$0xff] %vm124, %v114
    %132 = vst.msk [vmem:[#allocation5 + $0x38] sm:$0xff] %vm124, %v115
    %133 = vst.msk [vmem:[#allocation5 + $0x40] sm:$0xff] %vm124, %v116
    %134 = vst.msk [vmem:[#allocation5 + $0x48] sm:$0xff] %vm124, %v117
    %135 = vst.msk [vmem:[#allocation5 + $0x50] sm:$0xff] %vm124, %v118
    %136 = vst.msk [vmem:[#allocation5 + $0x58] sm:$0xff] %vm124, %v119
    %137 = vst.msk [vmem:[#allocation5 + $0x60] sm:$0xff] %vm124, %v120
    %138 = vst.msk [vmem:[#allocation5 + $0x68] sm:$0xff] %vm124, %v121
    %139 = vst.msk [vmem:[#allocation5 + $0x70] sm:$0xff] %vm124, %v122
    %140 = vst.msk [vmem:[#allocation5 + $0x78] sm:$0xff] %vm124, %v123
    // Predicated region
    $region14: #{_normalize_and_score_impl.3} parent=1 // pred_check
      _
    $region15: #{_normalize_and_score_impl.3} parent=1 // pred_check_branch
      %142 = sbr.rel (0) target = $region17
    $region16: #{_normalize_and_score_impl.3} parent=1 // pred_region
      %s144 = ssub.s32 2048, 2048
      %145 = vsyncadd [#allocation4], %s144
      %s146 = sshll.u32 [#allocation5], 4
      %s147 = int_to_ptr.vmem [resolvable:$true] %s146
      %152 = dma.vmem_to_hbm [thread:$0]  %s147, 2048, %s1, [#allocation4], 128, 128, 8
    $region17: #{_normalize_and_score_impl.3} parent=1 // pred_fallthru
      _
    // Predicated region
    $region18: #{_normalize_and_score_impl.3} parent=1 // pred_check
      _
    $region19: #{_normalize_and_score_impl.3} parent=1 // pred_check_branch
      %154 = sbr.rel (0) target = $region21
    $region20: #{_normalize_and_score_impl.3} parent=1 // pred_region
      %155 = dma.done [#allocation4], 2048
    $region21: #{_normalize_and_score_impl.3} parent=1 // pred_fallthru
      _
    %156 = vsyncpa [#allocation3], 1
    %157 = vsyncpa [#allocation4], 1

// kernel: _normalize_and_score_impl.5
$region0: #{_normalize_and_score_impl.5}
  #allocation0 [shape = 'u32[]', space=smem, size = 0x4, offset = 0x4, fixed_abs, tag = 'smem constant byte address 0x4 - core index']
  #allocation1 [shape = 'u32[144,128]{1,0:T(1,128)}', space=vmem, size = 0x12000, scoped, tag = 'internal scratch']
  %s0 = inlined_call_operand.hbm [shape: f32[128,128], index: 0, kind: input, shape index: {}, may-alias: {0,4}]
  %s1 = inlined_call_operand.hbm [shape: f32[128,1], index: 1, kind: input, shape index: {}]
  %s2 = inlined_call_operand.hbm [shape: f32[1,128], index: 2, kind: input, shape index: {}]
  %s3 = inlined_call_operand.hbm [shape: f32[128,1], index: 3, kind: input, shape index: {}]
  %s4 = inlined_call_operand.hbm [shape: f32[128,128], index: 4, kind: output, shape index: {0}, may-alias: {0,4}]
  %s5 = inlined_call_operand.hbm [shape: f32[1,128], index: 5, kind: output, shape index: {1}]
  %6 = xla_tuple %s4, %s5
  %s7 = sld [smem:[#allocation0]]
  $region58: #{_normalize_and_score_impl.5} parent=0
    _
  %s9 = ssub.s32 1, %s7
  %s10 = scalar_select 0, %s9, %s7
  $region1: #{_normalize_and_score_impl.5} parent=0
    #allocation2 [shape = 'u8[65536]{0}', space=vmem, size = 0x10000, scoped, tag = 'input window, operand 0, single buffered']
    #allocation3 [shape = 's32[1]{0}', space=sflag, size = 0x4, scoped, tag = 'scoped memory for _normalize_and_score_impl.5']
    #allocation4 [shape = 's32[1]{0}', space=sflag, size = 0x4, scoped, tag = 'scoped memory for _normalize_and_score_impl.5']
    #allocation5 [shape = 'u8[65536]{0}', space=vmem, size = 0x10000, scoped, tag = 'input window, operand 1, single buffered']
    #allocation6 [shape = 's32[1]{0}', space=sflag, size = 0x4, scoped, tag = 'scoped memory for _normalize_and_score_impl.5']
    #allocation7 [shape = 'u8[512]{0}', space=vmem, size = 0x400, scoped, tag = 'input window, operand 2, single buffered']
    #allocation8 [shape = 'u8[65536]{0}', space=vmem, size = 0x10000, scoped, tag = 'input window, operand 3, single buffered']
    #allocation9 [shape = 's32[1]{0}', space=sflag, size = 0x4, scoped, tag = 'scoped memory for _normalize_and_score_impl.5']
    #allocation10 [shape = 'u8[65536]{0}', space=vmem, size = 0x10000, scoped, tag = 'output window, operand 0, single buffered']
    #allocation11 [shape = 'u8[512]{0}', space=vmem, size = 0x400, scoped, tag = 'output window, operand 1, single buffered']
    #allocation12 [shape = 's32[1]{0}', space=sflag, size = 0x4, scoped, tag = 'scoped memory for _normalize_and_score_impl.5']
    %11 = vsyncpa [#allocation3], 0
    %12 = vsyncpa [#allocation6], 0
    %13 = vsyncpa [#allocation9], 0
    %14 = vsyncpa [#allocation4], 0
    %15 = vsyncpa [#allocation12], 0
    // Predicated region
    $region2: #{_normalize_and_score_impl.5} parent=1 // pred_check
      _
    $region3: #{_normalize_and_score_impl.5} parent=1 // pred_check_branch
      %17 = sbr.rel (0) target = $region5
    $region4: #{_normalize_and_score_impl.5} parent=1 // pred_region
      %s19 = ssub.s32 2048, 2048
      %20 = vsyncadd [#allocation3], %s19
      %s21 = sshll.u32 [#allocation2], 4
      %s22 = int_to_ptr.vmem [resolvable:$true] %s21
      %27 = dma.hbm_to_vmem [thread:$0]  %s0, 2048, %s22, [#allocation3], 128, 128, 8
    $region5: #{_normalize_and_score_impl.5} parent=1 // pred_fallthru
      _
    // Predicated region
    $region6: #{_normalize_and_score_impl.5} parent=1 // pred_check
      _
    $region7: #{_normalize_and_score_impl.5} parent=1 // pred_check_branch
      %29 = sbr.rel (0) target = $region9
    $region8: #{_normalize_and_score_impl.5} parent=1 // pred_region
      %s31 = ssub.s32 2048, 2048
      %32 = vsyncadd [#allocation6], %s31
      %s33 = sshll.u32 [#allocation5], 4
      %s34 = int_to_ptr.vmem [resolvable:$true] %s33
      %39 = dma.hbm_to_vmem [thread:$0]  %s1, 2048, %s34, [#allocation6], 128, 128, 8
    $region9: #{_normalize_and_score_impl.5} parent=1 // pred_fallthru
      _
    // Predicated region
    $region10: #{_normalize_and_score_impl.5} parent=1 // pred_check
      _
    $region11: #{_normalize_and_score_impl.5} parent=1 // pred_check_branch
      %41 = sbr.rel (0) target = $region13
    $region12: #{_normalize_and_score_impl.5} parent=1 // pred_region
      %s43 = ssub.s32 16, 16
      %44 = vsyncadd [#allocation6], %s43
      %s46 = sshll.u32 [#allocation7], 4
      %s47 = int_to_ptr.vmem [resolvable:$true] %s46
      %49 = dma.hbm_to_vmem [thread:$0]  %s2, 16, %s47, [#allocation6]
    $region13: #{_normalize_and_score_impl.5} parent=1 // pred_fallthru
      _
    // Predicated region
    $region14: #{_normalize_and_score_impl.5} parent=1 // pred_check
      _
    $region15: #{_normalize_and_score_impl.5} parent=1 // pred_check_branch
      %51 = sbr.rel (0) target = $region17
    $region16: #{_normalize_and_score_impl.5} parent=1 // pred_region
      %s53 = ssub.s32 2048, 2048
      %54 = vsyncadd [#allocation9], %s53
      %s55 = sshll.u32 [#allocation8], 4
      %s56 = int_to_ptr.vmem [resolvable:$true] %s55
      %61 = dma.hbm_to_vmem [thread:$0]  %s3, 2048, %s56, [#allocation9], 128, 128, 8
    $region17: #{_normalize_and_score_impl.5} parent=1 // pred_fallthru
      _
    // Predicated region
    $region18: #{_normalize_and_score_impl.5} parent=1 // pred_check
      _
    $region19: #{_normalize_and_score_impl.5} parent=1 // pred_check_branch
      %63 = sbr.rel (0) target = $region21
    $region20: #{_normalize_and_score_impl.5} parent=1 // pred_region
      %64 = dma.done [#allocation3], 2048
    $region21: #{_normalize_and_score_impl.5} parent=1 // pred_fallthru
      _
    // Predicated region
    $region22: #{_normalize_and_score_impl.5} parent=1 // pred_check
      _
    $region23: #{_normalize_and_score_impl.5} parent=1 // pred_check_branch
      %66 = sbr.rel (0) target = $region25
    $region24: #{_normalize_and_score_impl.5} parent=1 // pred_region
      %67 = dma.done [#allocation6], 2048
    $region25: #{_normalize_and_score_impl.5} parent=1 // pred_fallthru
      _
    // Predicated region
    $region26: #{_normalize_and_score_impl.5} parent=1 // pred_check
      _
    $region27: #{_normalize_and_score_impl.5} parent=1 // pred_check_branch
      %69 = sbr.rel (0) target = $region29
    $region28: #{_normalize_and_score_impl.5} parent=1 // pred_region
      %70 = dma.done [#allocation6], 16
    $region29: #{_normalize_and_score_impl.5} parent=1 // pred_fallthru
      _
    // Predicated region
    $region30: #{_normalize_and_score_impl.5} parent=1 // pred_check
      _
    $region31: #{_normalize_and_score_impl.5} parent=1 // pred_check_branch
      %72 = sbr.rel (0) target = $region33
    $region32: #{_normalize_and_score_impl.5} parent=1 // pred_region
      %73 = dma.done [#allocation9], 2048
    $region33: #{_normalize_and_score_impl.5} parent=1 // pred_fallthru
      _
    %p74 = scmp.eq.s32.totalorder 0, 0
    // Predicated region
    $region34: #{_normalize_and_score_impl.5} parent=1 // pred_check
      %p75 = pneg %p74
    $region35: #{_normalize_and_score_impl.5} parent=1 // pred_check_branch
      %77 = sbr.rel (%p75) target = $region37
    $region36: #{_normalize_and_score_impl.5} parent=1 // pred_region
      %78 = vst [vmem:[#allocation11] sm:$0x1] 0.0
    $region37: #{_normalize_and_score_impl.5} parent=1 // pred_fallthru
      _
    %v79 = vld [vmem:[#allocation2] sm:$0xff]
    %v80 = vld [vmem:[#allocation2 + $0x8] sm:$0xff]
    %v81 = vld [vmem:[#allocation2 + $0x10] sm:$0xff]
    %v82 = vld [vmem:[#allocation2 + $0x18] sm:$0xff]
    %v83 = vld [vmem:[#allocation2 + $0x20] sm:$0xff]
    %v84 = vld [vmem:[#allocation2 + $0x28] sm:$0xff]
    %v85 = vld [vmem:[#allocation2 + $0x30] sm:$0xff]
    %v86 = vld [vmem:[#allocation2 + $0x38] sm:$0xff]
    %v87 = vld [vmem:[#allocation2 + $0x40] sm:$0xff]
    %v88 = vld [vmem:[#allocation2 + $0x48] sm:$0xff]
    %v89 = vld [vmem:[#allocation2 + $0x50] sm:$0xff]
    %v90 = vld [vmem:[#allocation2 + $0x58] sm:$0xff]
    %v91 = vld [vmem:[#allocation2 + $0x60] sm:$0xff]
    %v92 = vld [vmem:[#allocation2 + $0x68] sm:$0xff]
    %v93 = vld [vmem:[#allocation2 + $0x70] sm:$0xff]
    %v94 = vld [vmem:[#allocation2 + $0x78] sm:$0xff]
    %v95 = vld [vmem:[#allocation11] sm:$0x1]
    %v96 = vld [vmem:[#allocation8] sm:$0xff]
    %v97 = vld [vmem:[#allocation8 + $0x8] sm:$0xff]
    %v98 = vld [vmem:[#allocation8 + $0x10] sm:$0xff]
    %v99 = vld [vmem:[#allocation8 + $0x18] sm:$0xff]
    %v100 = vld [vmem:[#allocation8 + $0x20] sm:$0xff]
    %v101 = vld [vmem:[#allocation8 + $0x28] sm:$0xff]
    %v102 = vld [vmem:[#allocation8 + $0x30] sm:$0xff]
    %v103 = vld [vmem:[#allocation8 + $0x38] sm:$0xff]
    %v104 = vld [vmem:[#allocation8 + $0x40] sm:$0xff]
    %v105 = vld [vmem:[#allocation8 + $0x48] sm:$0xff]
    %v106 = vld [vmem:[#allocation8 + $0x50] sm:$0xff]
    %v107 = vld [vmem:[#allocation8 + $0x58] sm:$0xff]
    %v108 = vld [vmem:[#allocation8 + $0x60] sm:$0xff]
    %v109 = vld [vmem:[#allocation8 + $0x68] sm:$0xff]
    %v110 = vld [vmem:[#allocation8 + $0x70] sm:$0xff]
    %v111 = vld [vmem:[#allocation8 + $0x78] sm:$0xff]
    %113 = vset.pattern.permute.xlu0 0
    %114 = vperm.xlu0 %113, %v96
    %v115 = vpop.permute.xlu0 %114
    %118 = vset.pattern.permute.xlu0 0
    %119 = vperm.xlu0 %118, %v97
    %v120 = vpop.permute.xlu0 %119
    %123 = vset.pattern.permute.xlu0 0
    %124 = vperm.xlu0 %123, %v98
    %v125 = vpop.permute.xlu0 %124
    %128 = vset.pattern.permute.xlu0 0
    %129 = vperm.xlu0 %128, %v99
    %v130 = vpop.permute.xlu0 %129
    %133 = vset.pattern.permute.xlu0 0
    %134 = vperm.xlu0 %133, %v100
    %v135 = vpop.permute.xlu0 %134
    %138 = vset.pattern.permute.xlu0 0
    %139 = vperm.xlu0 %138, %v101
    %v140 = vpop.permute.xlu0 %139
    %143 = vset.pattern.permute.xlu0 0
    %144 = vperm.xlu0 %143, %v102
    %v145 = vpop.permute.xlu0 %144
    %148 = vset.pattern.permute.xlu0 0
    %149 = vperm.xlu0 %148, %v103
    %v150 = vpop.permute.xlu0 %149
    %153 = vset.pattern.permute.xlu0 0
    %154 = vperm.xlu0 %153, %v104
    %v155 = vpop.permute.xlu0 %154
    %158 = vset.pattern.permute.xlu0 0
    %159 = vperm.xlu0 %158, %v105
    %v160 = vpop.permute.xlu0 %159
    %163 = vset.pattern.permute.xlu0 0
    %164 = vperm.xlu0 %163, %v106
    %v165 = vpop.permute.xlu0 %164
    %168 = vset.pattern.permute.xlu0 0
    %169 = vperm.xlu0 %168, %v107
    %v170 = vpop.permute.xlu0 %169
    %173 = vset.pattern.permute.xlu0 0
    %174 = vperm.xlu0 %173, %v108
    %v175 = vpop.permute.xlu0 %174
    %178 = vset.pattern.permute.xlu0 0
    %179 = vperm.xlu0 %178, %v109
    %v180 = vpop.permute.xlu0 %179
    %183 = vset.pattern.permute.xlu0 0
    %184 = vperm.xlu0 %183, %v110
    %v185 = vpop.permute.xlu0 %184
    %188 = vset.pattern.permute.xlu0 0
    %189 = vperm.xlu0 %188, %v111
    %v190 = vpop.permute.xlu0 %189
    %v192 = vmul.f32 %v79, %v115
    %v193 = vmul.f32 %v80, %v120
    %v194 = vmul.f32 %v81, %v125
    %v195 = vmul.f32 %v82, %v130
    %v196 = vmul.f32 %v83, %v135
    %v197 = vmul.f32 %v84, %v140
    %v198 = vmul.f32 %v85, %v145
    %v199 = vmul.f32 %v86, %v150
    %v200 = vmul.f32 %v87, %v155
    %v201 = vmul.f32 %v88, %v160
    %v202 = vmul.f32 %v89, %v165
    %v203 = vmul.f32 %v90, %v170
    %v204 = vmul.f32 %v91, %v175
    %v205 = vmul.f32 %v92, %v180
    %v206 = vmul.f32 %v93, %v185
    %v207 = vmul.f32 %v94, %v190
    %v208 = vadd.f32 %v192, %v193
    %v209 = vadd.f32 %v208, %v194
    %v210 = vadd.f32 %v209, %v195
    %v211 = vadd.f32 %v210, %v196
    %v212 = vadd.f32 %v211, %v197
    %v213 = vadd.f32 %v212, %v198
    %v214 = vadd.f32 %v213, %v199
    %v215 = vadd.f32 %v214, %v200
    %v216 = vadd.f32 %v215, %v201
    %v217 = vadd.f32 %v216, %v202
    %v218 = vadd.f32 %v217, %v203
    %v219 = vadd.f32 %v218, %v204
    %v220 = vadd.f32 %v219, %v205
    %v221 = vadd.f32 %v220, %v206
    %v222 = vadd.f32 %v221, %v207
    %v223 = vrot.slane %v222, 4
    %v224 = vadd.f32 %v222, %v223
    %v225 = vrot.slane %v224, 2
    %v226 = vadd.f32 %v224, %v225
    %v227 = vrot.slane %v226, 1
    %v228 = vadd.f32 %v226, %v227
    %v229 = vadd.f32 %v95, %v228
    %230 = vst [vmem:[#allocation11] sm:$0x1] %v229
    %v231 = vld [vmem:[#allocation5] sm:$0xff]
    %v232 = vld [vmem:[#allocation5 + $0x8] sm:$0xff]
    %v233 = vld [vmem:[#allocation5 + $0x10] sm:$0xff]
    %v234 = vld [vmem:[#allocation5 + $0x18] sm:$0xff]
    %v235 = vld [vmem:[#allocation5 + $0x20] sm:$0xff]
    %v236 = vld [vmem:[#allocation5 + $0x28] sm:$0xff]
    %v237 = vld [vmem:[#allocation5 + $0x30] sm:$0xff]
    %v238 = vld [vmem:[#allocation5 + $0x38] sm:$0xff]
    %v239 = vld [vmem:[#allocation5 + $0x40] sm:$0xff]
    %v240 = vld [vmem:[#allocation5 + $0x48] sm:$0xff]
    %v241 = vld [vmem:[#allocation5 + $0x50] sm:$0xff]
    %v242 = vld [vmem:[#allocation5 + $0x58] sm:$0xff]
    %v243 = vld [vmem:[#allocation5 + $0x60] sm:$0xff]
    %v244 = vld [vmem:[#allocation5 + $0x68] sm:$0xff]
    %v245 = vld [vmem:[#allocation5 + $0x70] sm:$0xff]
    %v246 = vld [vmem:[#allocation5 + $0x78] sm:$0xff]
    %248 = vset.pattern.permute.xlu0 0
    %249 = vperm.xlu0 %248, %v231
    %v250 = vpop.permute.xlu0 %249
    %253 = vset.pattern.permute.xlu0 0
    %254 = vperm.xlu0 %253, %v232
    %v255 = vpop.permute.xlu0 %254
    %258 = vset.pattern.permute.xlu0 0
    %259 = vperm.xlu0 %258, %v233
    %v260 = vpop.permute.xlu0 %259
    %263 = vset.pattern.permute.xlu0 0
    %264 = vperm.xlu0 %263, %v234
    %v265 = vpop.permute.xlu0 %264
    %268 = vset.pattern.permute.xlu0 0
    %269 = vperm.xlu0 %268, %v235
    %v270 = vpop.permute.xlu0 %269
    %273 = vset.pattern.permute.xlu0 0
    %274 = vperm.xlu0 %273, %v236
    %v275 = vpop.permute.xlu0 %274
    %278 = vset.pattern.permute.xlu0 0
    %279 = vperm.xlu0 %278, %v237
    %v280 = vpop.permute.xlu0 %279
    %283 = vset.pattern.permute.xlu0 0
    %284 = vperm.xlu0 %283, %v238
    %v285 = vpop.permute.xlu0 %284
    %288 = vset.pattern.permute.xlu0 0
    %289 = vperm.xlu0 %288, %v239
    %v290 = vpop.permute.xlu0 %289
    %293 = vset.pattern.permute.xlu0 0
    %294 = vperm.xlu0 %293, %v240
    %v295 = vpop.permute.xlu0 %294
    %298 = vset.pattern.permute.xlu0 0
    %299 = vperm.xlu0 %298, %v241
    %v300 = vpop.permute.xlu0 %299
    %303 = vset.pattern.permute.xlu0 0
    %304 = vperm.xlu0 %303, %v242
    %v305 = vpop.permute.xlu0 %304
    %308 = vset.pattern.permute.xlu0 0
    %309 = vperm.xlu0 %308, %v243
    %v310 = vpop.permute.xlu0 %309
    %313 = vset.pattern.permute.xlu0 0
    %314 = vperm.xlu0 %313, %v244
    %v315 = vpop.permute.xlu0 %314
    %318 = vset.pattern.permute.xlu0 0
    %319 = vperm.xlu0 %318, %v245
    %v320 = vpop.permute.xlu0 %319
    %323 = vset.pattern.permute.xlu0 0
    %324 = vperm.xlu0 %323, %v246
    %v325 = vpop.permute.xlu0 %324
    %v327 = vmul.f32 %v250, %v79
    %v328 = vmul.f32 %v255, %v80
    %v329 = vmul.f32 %v260, %v81
    %v330 = vmul.f32 %v265, %v82
    %v331 = vmul.f32 %v270, %v83
    %v332 = vmul.f32 %v275, %v84
    %v333 = vmul.f32 %v280, %v85
    %v334 = vmul.f32 %v285, %v86
    %v335 = vmul.f32 %v290, %v87
    %v336 = vmul.f32 %v295, %v88
    %v337 = vmul.f32 %v300, %v89
    %v338 = vmul.f32 %v305, %v90
    %v339 = vmul.f32 %v310, %v91
    %v340 = vmul.f32 %v315, %v92
    %v341 = vmul.f32 %v320, %v93
    %v342 = vmul.f32 %v325, %v94
    %v343 = vld [vmem:[#allocation7] sm:$0x1]
    %v345 = vlaneseq
    %v346 = vshrl.u32 %v345, 7
    %v347 = vsub.s32 0, %v346
    %v348 = vrot.slane %v343, %v347
    %v350 = vmul.f32 %v327, %v348
    %v351 = vmul.f32 %v328, %v348
    %v352 = vmul.f32 %v329, %v348
    %v353 = vmul.f32 %v330, %v348
    %v354 = vmul.f32 %v331, %v348
    %v355 = vmul.f32 %v332, %v348
    %v356 = vmul.f32 %v333, %v348
    %v357 = vmul.f32 %v334, %v348
    %v358 = vmul.f32 %v335, %v348
    %v359 = vmul.f32 %v336, %v348
    %v360 = vmul.f32 %v337, %v348
    %v361 = vmul.f32 %v338, %v348
    %v362 = vmul.f32 %v339, %v348
    %v363 = vmul.f32 %v340, %v348
    %v364 = vmul.f32 %v341, %v348
    %v365 = vmul.f32 %v342, %v348
    %366 = vst [vmem:[#allocation10] sm:$0xff] %v350
    %367 = vst [vmem:[#allocation10 + $0x8] sm:$0xff] %v351
    %368 = vst [vmem:[#allocation10 + $0x10] sm:$0xff] %v352
    %369 = vst [vmem:[#allocation10 + $0x18] sm:$0xff] %v353
    %370 = vst [vmem:[#allocation10 + $0x20] sm:$0xff] %v354
    %371 = vst [vmem:[#allocation10 + $0x28] sm:$0xff] %v355
    %372 = vst [vmem:[#allocation10 + $0x30] sm:$0xff] %v356
    %373 = vst [vmem:[#allocation10 + $0x38] sm:$0xff] %v357
    %374 = vst [vmem:[#allocation10 + $0x40] sm:$0xff] %v358
    %375 = vst [vmem:[#allocation10 + $0x48] sm:$0xff] %v359
    %376 = vst [vmem:[#allocation10 + $0x50] sm:$0xff] %v360
    %377 = vst [vmem:[#allocation10 + $0x58] sm:$0xff] %v361
    %378 = vst [vmem:[#allocation10 + $0x60] sm:$0xff] %v362
    %379 = vst [vmem:[#allocation10 + $0x68] sm:$0xff] %v363
    %380 = vst [vmem:[#allocation10 + $0x70] sm:$0xff] %v364
    %381 = vst [vmem:[#allocation10 + $0x78] sm:$0xff] %v365
    %s382 = smul.u32 0, 128
    %s383 = smul.u32 0, 128
    %s384 = sadd.s32 %s383, 128
    %p385 = scmp.lt.s32.totalorder %s382, %s384
    %s386 = sadd.s32 %s382, 128
    %p387 = scmp.lt.s32.totalorder %s383, %s386
    %p388 = pnand %p385, %p387
    %p389 = pneg %p388
    // Predicated region
    $region38: #{_normalize_and_score_impl.5} parent=1 // pred_check
      _
    $region39: #{_normalize_and_score_impl.5} parent=1 // pred_check_branch
      %391 = sbr.rel (%p388) target = $region41
    $region40: #{_normalize_and_score_impl.5} parent=1 // pred_region
      %v392 = vlaneseq
      %v393 = vshrl.u32 %v392, 7
      %v394 = vadd.s32 %v393, 8
      %v395 = vadd.s32 %v393, 16
      %v396 = vadd.s32 %v393, 24
      %v397 = vadd.s32 %v393, 32
      %v398 = vadd.s32 %v393, 40
      %v399 = vadd.s32 %v393, 48
      %v400 = vadd.s32 %v393, 56
      %v401 = vadd.s32 %v393, 64
      %v402 = vadd.s32 %v393, 72
      %v403 = vadd.s32 %v393, 80
      %v404 = vadd.s32 %v393, 88
      %v405 = vadd.s32 %v393, 96
      %v406 = vadd.s32 %v393, 104
      %v407 = vadd.s32 %v393, 112
      %v408 = vadd.s32 %v393, 120
      %v409 = vstv %s382
      %v410 = vadd.s32 %v393, %v409
      %v411 = vadd.s32 %v394, %v409
      %v412 = vadd.s32 %v395, %v409
      %v413 = vadd.s32 %v396, %v409
      %v414 = vadd.s32 %v397, %v409
      %v415 = vadd.s32 %v398, %v409
      %v416 = vadd.s32 %v399, %v409
      %v417 = vadd.s32 %v400, %v409
      %v418 = vadd.s32 %v401, %v409
      %v419 = vadd.s32 %v402, %v409
      %v420 = vadd.s32 %v403, %v409
      %v421 = vadd.s32 %v404, %v409
      %v422 = vadd.s32 %v405, %v409
      %v423 = vadd.s32 %v406, %v409
      %v424 = vadd.s32 %v407, %v409
      %v425 = vadd.s32 %v408, %v409
      %v426 = vlaneseq
      %v427 = vand.u32 %v426, 127
      %v428 = vstv %s383
      %v429 = vadd.s32 %v427, %v428
      %v430 = vld [vmem:[#allocation10] sm:$0xff]
      %v431 = vld [vmem:[#allocation10 + $0x8] sm:$0xff]
      %v432 = vld [vmem:[#allocation10 + $0x10] sm:$0xff]
      %v433 = vld [vmem:[#allocation10 + $0x18] sm:$0xff]
      %v434 = vld [vmem:[#allocation10 + $0x20] sm:$0xff]
      %v435 = vld [vmem:[#allocation10 + $0x28] sm:$0xff]
      %v436 = vld [vmem:[#allocation10 + $0x30] sm:$0xff]
      %v437 = vld [vmem:[#allocation10 + $0x38] sm:$0xff]
      %v438 = vld [vmem:[#allocation10 + $0x40] sm:$0xff]
      %v439 = vld [vmem:[#allocation10 + $0x48] sm:$0xff]
      %v440 = vld [vmem:[#allocation10 + $0x50] sm:$0xff]
      %v441 = vld [vmem:[#allocation10 + $0x58] sm:$0xff]
      %v442 = vld [vmem:[#allocation10 + $0x60] sm:$0xff]
      %v443 = vld [vmem:[#allocation10 + $0x68] sm:$0xff]
      %v444 = vld [vmem:[#allocation10 + $0x70] sm:$0xff]
      %v445 = vld [vmem:[#allocation10 + $0x78] sm:$0xff]
      %vm446 = vcmp.eq.s32.totalorder %v410, %v429
      %vm447 = vcmp.eq.s32.totalorder %v411, %v429
      %vm448 = vcmp.eq.s32.totalorder %v412, %v429
      %vm449 = vcmp.eq.s32.totalorder %v413, %v429
      %vm450 = vcmp.eq.s32.totalorder %v414, %v429
      %vm451 = vcmp.eq.s32.totalorder %v415, %v429
      %vm452 = vcmp.eq.s32.totalorder %v416, %v429
      %vm453 = vcmp.eq.s32.totalorder %v417, %v429
      %vm454 = vcmp.eq.s32.totalorder %v418, %v429
      %vm455 = vcmp.eq.s32.totalorder %v419, %v429
      %vm456 = vcmp.eq.s32.totalorder %v420, %v429
      %vm457 = vcmp.eq.s32.totalorder %v421, %v429
      %vm458 = vcmp.eq.s32.totalorder %v422, %v429
      %vm459 = vcmp.eq.s32.totalorder %v423, %v429
      %vm460 = vcmp.eq.s32.totalorder %v424, %v429
      %vm461 = vcmp.eq.s32.totalorder %v425, %v429
      %v462 = vsel %vm446, 1, 0
      %v463 = vsel %vm447, 1, 0
      %v464 = vsel %vm448, 1, 0
      %v465 = vsel %vm449, 1, 0
      %v466 = vsel %vm450, 1, 0
      %v467 = vsel %vm451, 1, 0
      %v468 = vsel %vm452, 1, 0
      %v469 = vsel %vm453, 1, 0
      %v470 = vsel %vm454, 1, 0
      %v471 = vsel %vm455, 1, 0
      %v472 = vsel %vm456, 1, 0
      %v473 = vsel %vm457, 1, 0
      %v474 = vsel %vm458, 1, 0
      %v475 = vsel %vm459, 1, 0
      %v476 = vsel %vm460, 1, 0
      %v477 = vsel %vm461, 1, 0
      %v478 = vcvt.s32.f32 %v462
      %v479 = vcvt.s32.f32 %v463
      %v480 = vcvt.s32.f32 %v464
      %v481 = vcvt.s32.f32 %v465
      %v482 = vcvt.s32.f32 %v466
      %v483 = vcvt.s32.f32 %v467
      %v484 = vcvt.s32.f32 %v468
      %v485 = vcvt.s32.f32 %v469
      %v486 = vcvt.s32.f32 %v470
      %v487 = vcvt.s32.f32 %v471
      %v488 = vcvt.s32.f32 %v472
      %v489 = vcvt.s32.f32 %v473
      %v490 = vcvt.s32.f32 %v474
      %v491 = vcvt.s32.f32 %v475
      %v492 = vcvt.s32.f32 %v476
      %v493 = vcvt.s32.f32 %v477
      %v494 = vld [vmem:[#allocation5] sm:$0xff]
      %v495 = vld [vmem:[#allocation5 + $0x8] sm:$0xff]
      %v496 = vld [vmem:[#allocation5 + $0x10] sm:$0xff]
      %v497 = vld [vmem:[#allocation5 + $0x18] sm:$0xff]
      %v498 = vld [vmem:[#allocation5 + $0x20] sm:$0xff]
      %v499 = vld [vmem:[#allocation5 + $0x28] sm:$0xff]
      %v500 = vld [vmem:[#allocation5 + $0x30] sm:$0xff]
      %v501 = vld [vmem:[#allocation5 + $0x38] sm:$0xff]
      %v502 = vld [vmem:[#allocation5 + $0x40] sm:$0xff]
      %v503 = vld [vmem:[#allocation5 + $0x48] sm:$0xff]
      %v504 = vld [vmem:[#allocation5 + $0x50] sm:$0xff]
      %v505 = vld [vmem:[#allocation5 + $0x58] sm:$0xff]
      %v506 = vld [vmem:[#allocation5 + $0x60] sm:$0xff]
      %v507 = vld [vmem:[#allocation5 + $0x68] sm:$0xff]
      %v508 = vld [vmem:[#allocation5 + $0x70] sm:$0xff]
      %v509 = vld [vmem:[#allocation5 + $0x78] sm:$0xff]
      %v510 = vld [vmem:[#allocation7] sm:$0x1]
      %512 = vset.pattern.permute.xlu0 0
      %513 = vperm.xlu0 %512, %v494
      %v514 = vpop.permute.xlu0 %513
      %517 = vset.pattern.permute.xlu0 0
      %518 = vperm.xlu0 %517, %v495
      %v519 = vpop.permute.xlu0 %518
      %522 = vset.pattern.permute.xlu0 0
      %523 = vperm.xlu0 %522, %v496
      %v524 = vpop.permute.xlu0 %523
      %527 = vset.pattern.permute.xlu0 0
      %528 = vperm.xlu0 %527, %v497
      %v529 = vpop.permute.xlu0 %528
      %532 = vset.pattern.permute.xlu0 0
      %533 = vperm.xlu0 %532, %v498
      %v534 = vpop.permute.xlu0 %533
      %537 = vset.pattern.permute.xlu0 0
      %538 = vperm.xlu0 %537, %v499
      %v539 = vpop.permute.xlu0 %538
      %542 = vset.pattern.permute.xlu0 0
      %543 = vperm.xlu0 %542, %v500
      %v544 = vpop.permute.xlu0 %543
      %547 = vset.pattern.permute.xlu0 0
      %548 = vperm.xlu0 %547, %v501
      %v549 = vpop.permute.xlu0 %548
      %552 = vset.pattern.permute.xlu0 0
      %553 = vperm.xlu0 %552, %v502
      %v554 = vpop.permute.xlu0 %553
      %557 = vset.pattern.permute.xlu0 0
      %558 = vperm.xlu0 %557, %v503
      %v559 = vpop.permute.xlu0 %558
      %562 = vset.pattern.permute.xlu0 0
      %563 = vperm.xlu0 %562, %v504
      %v564 = vpop.permute.xlu0 %563
      %567 = vset.pattern.permute.xlu0 0
      %568 = vperm.xlu0 %567, %v505
      %v569 = vpop.permute.xlu0 %568
      %572 = vset.pattern.permute.xlu0 0
      %573 = vperm.xlu0 %572, %v506
      %v574 = vpop.permute.xlu0 %573
      %577 = vset.pattern.permute.xlu0 0
      %578 = vperm.xlu0 %577, %v507
      %v579 = vpop.permute.xlu0 %578
      %582 = vset.pattern.permute.xlu0 0
      %583 = vperm.xlu0 %582, %v508
      %v584 = vpop.permute.xlu0 %583
      %587 = vset.pattern.permute.xlu0 0
      %588 = vperm.xlu0 %587, %v509
      %v589 = vpop.permute.xlu0 %588
      %v592 = vlaneseq
      %v593 = vshrl.u32 %v592, 7
      %v594 = vsub.s32 0, %v593
      %v595 = vrot.slane %v510, %v594
      %v597 = vmul.f32 %v514, %v595
      %v598 = vmul.f32 %v519, %v595
      %v599 = vmul.f32 %v524, %v595
      %v600 = vmul.f32 %v529, %v595
      %v601 = vmul.f32 %v534, %v595
      %v602 = vmul.f32 %v539, %v595
      %v603 = vmul.f32 %v544, %v595
      %v604 = vmul.f32 %v549, %v595
      %v605 = vmul.f32 %v554, %v595
      %v606 = vmul.f32 %v559, %v595
      %v607 = vmul.f32 %v564, %v595
      %v608 = vmul.f32 %v569, %v595
      %v609 = vmul.f32 %v574, %v595
      %v610 = vmul.f32 %v579, %v595
      %v611 = vmul.f32 %v584, %v595
      %v612 = vmul.f32 %v589, %v595
      %v613 = vmul.f32 %v478, %v597
      %v614 = vmul.f32 %v479, %v598
      %v615 = vmul.f32 %v480, %v599
      %v616 = vmul.f32 %v481, %v600
      %v617 = vmul.f32 %v482, %v601
      %v618 = vmul.f32 %v483, %v602
      %v619 = vmul.f32 %v484, %v603
      %v620 = vmul.f32 %v485, %v604
      %v621 = vmul.f32 %v486, %v605
      %v622 = vmul.f32 %v487, %v606
      %v623 = vmul.f32 %v488, %v607
      %v624 = vmul.f32 %v489, %v608
      %v625 = vmul.f32 %v490, %v609
      %v626 = vmul.f32 %v491, %v610
      %v627 = vmul.f32 %v492, %v611
      %v628 = vmul.f32 %v493, %v612
      %v629 = vadd.f32 %v430, %v613
      %v630 = vadd.f32 %v431, %v614
      %v631 = vadd.f32 %v432, %v615
      %v632 = vadd.f32 %v433, %v616
      %v633 = vadd.f32 %v434, %v617
      %v634 = vadd.f32 %v435, %v618
      %v635 = vadd.f32 %v436, %v619
      %v636 = vadd.f32 %v437, %v620
      %v637 = vadd.f32 %v438, %v621
      %v638 = vadd.f32 %v439, %v622
      %v639 = vadd.f32 %v440, %v623
      %v640 = vadd.f32 %v441, %v624
      %v641 = vadd.f32 %v442, %v625
      %v642 = vadd.f32 %v443, %v626
      %v643 = vadd.f32 %v444, %v627
      %v644 = vadd.f32 %v445, %v628
      %645 = vst [vmem:[#allocation10] sm:$0xff] %v629
      %646 = vst [vmem:[#allocation10 + $0x8] sm:$0xff] %v630
      %647 = vst [vmem:[#allocation10 + $0x10] sm:$0xff] %v631
      %648 = vst [vmem:[#allocation10 + $0x18] sm:$0xff] %v632
      %649 = vst [vmem:[#allocation10 + $0x20] sm:$0xff] %v633
      %650 = vst [vmem:[#allocation10 + $0x28] sm:$0xff] %v634
      %651 = vst [vmem:[#allocation10 + $0x30] sm:$0xff] %v635
      %652 = vst [vmem:[#allocation10 + $0x38] sm:$0xff] %v636
      %653 = vst [vmem:[#allocation10 + $0x40] sm:$0xff] %v637
      %654 = vst [vmem:[#allocation10 + $0x48] sm:$0xff] %v638
      %655 = vst [vmem:[#allocation10 + $0x50] sm:$0xff] %v639
      %656 = vst [vmem:[#allocation10 + $0x58] sm:$0xff] %v640
      %657 = vst [vmem:[#allocation10 + $0x60] sm:$0xff] %v641
      %658 = vst [vmem:[#allocation10 + $0x68] sm:$0xff] %v642
      %659 = vst [vmem:[#allocation10 + $0x70] sm:$0xff] %v643
      %660 = vst [vmem:[#allocation10 + $0x78] sm:$0xff] %v644
    $region41: #{_normalize_and_score_impl.5} parent=1 // pred_fallthru
      _
    // Predicated region
    $region42: #{_normalize_and_score_impl.5} parent=1 // pred_check
      _
    $region43: #{_normalize_and_score_impl.5} parent=1 // pred_check_branch
      %662 = sbr.rel (0) target = $region45
    $region44: #{_normalize_and_score_impl.5} parent=1 // pred_region
      %s664 = ssub.s32 2048, 2048
      %665 = vsyncadd [#allocation4], %s664
      %s666 = sshll.u32 [#allocation10], 4
      %s667 = int_to_ptr.vmem [resolvable:$true] %s666
      %672 = dma.vmem_to_hbm [thread:$0]  %s667, 2048, %s4, [#allocation4], 128, 128, 8
    $region45: #{_normalize_and_score_impl.5} parent=1 // pred_fallthru
      _
    // Predicated region
    $region46: #{_normalize_and_score_impl.5} parent=1 // pred_check
      _
    $region47: #{_normalize_and_score_impl.5} parent=1 // pred_check_branch
      %674 = sbr.rel (0) target = $region49
    $region48: #{_normalize_and_score_impl.5} parent=1 // pred_region
      %s676 = ssub.s32 16, 16
      %677 = vsyncadd [#allocation12], %s676
      %s679 = sshll.u32 [#allocation11], 4
      %s680 = int_to_ptr.vmem [resolvable:$true] %s679
      %682 = dma.vmem_to_hbm [thread:$0]  %s680, 16, %s5, [#allocation12]
    $region49: #{_normalize_and_score_impl.5} parent=1 // pred_fallthru
      _
    // Predicated region
    $region50: #{_normalize_and_score_impl.5} parent=1 // pred_check
      _
    $region51: #{_normalize_and_score_impl.5} parent=1 // pred_check_branch
      %684 = sbr.rel (0) target = $region53
    $region52: #{_normalize_and_score_impl.5} parent=1 // pred_region
      %685 = dma.done [#allocation4], 2048
    $region53: #{_normalize_and_score_impl.5} parent=1 // pred_fallthru
      _
    // Predicated region
    $region54: #{_normalize_and_score_impl.5} parent=1 // pred_check
      _
    $region55: #{_normalize_and_score_impl.5} parent=1 // pred_check_branch
      %687 = sbr.rel (0) target = $region57
    $region56: #{_normalize_and_score_impl.5} parent=1 // pred_region
      %688 = dma.done [#allocation12], 16
    $region57: #{_normalize_and_score_impl.5} parent=1 // pred_fallthru
      _
    %689 = vsyncpa [#allocation3], 1
    %690 = vsyncpa [#allocation6], 1
    %691 = vsyncpa [#allocation9], 1
    %692 = vsyncpa [#allocation4], 1
    %693 = vsyncpa [#allocation12], 1

</llo_original>
